<compile_context>
chip_gen: v7x
topology: tpu7x:2x2x1
jax: 0.10.0
libtpu: 0.0.40
codegen_flags: <defaults>
</compile_context>

<pallas_src>
import numpy as np
import jax
import jax.numpy as jnp
from jax.experimental import pallas as pl
from jax.experimental.pallas import tpu as pltpu

# ----------------------- config (consistent with the module) ----------------
B = 2                  # batch
P = 256                # points per sample
DP = 4                 # point feature dim (x, y, z, intensity)
C_IN = 64              # cfg.experiment.encoder.patch_feature_dim
C_OUT = 64             # cfg.experiment.model.decoder.in_feature_dim
H_TOK = W_TOK = 4      # ViT token grid (N = H*W = 16)
N_TOK = H_TOK * W_TOK
H_OUT = W_OUT = 8      # cfg.experiment.encoder.out_feature_size
HW_OUT = H_OUT * W_OUT
BN_EPS = 1e-5
K9 = 9                 # 3x3 conv taps
BC = B * C_IN          # 128 lanes: both batch elements packed lane-dense


# --------------------------------- kernel ------------------------------------
def fused_kernel(pts_ref, wpt_ref, bpt_ref, pos2_ref, s_ref, w_ref, bias_ref,
                 o_ref, umid_ref, u2_ref):
    # ---- stage 1: pp_vit stand-in, both batch elements lane-packed ----------
    # f[p, b*C_IN+c] = relu(sum_d points[b,p,d] * w_pt[d,c] + b_pt[c])
    f = jnp.dot(pts_ref[...], wpt_ref[...],
                preferred_element_type=jnp.float32)               # (P, 128)
    f = jnp.maximum(f + bpt_ref[...], 0.0)
    # max over points = sublane reduction -> directly the (1, 128) row we need
    gcat = jnp.max(f, axis=0, keepdims=True)                      # (1, 128)
    # tokens for both batches, lane-dense, kept in registers (2 vregs)
    xcat = (pos2_ref[...] + gcat).astype(jnp.bfloat16)            # (16, 128)

    # ---- stage 2: all 9 shifted bilinear-resize taps in ONE MXU matmul ------
    # umid[k*HW + p, b*C_IN + ci] = (S_k @ tokens_b)[p, ci]
    umid_ref[...] = jnp.dot(
        s_ref[...], xcat,
        preferred_element_type=jnp.float32).astype(jnp.bfloat16)  # (576, 128)

    # k-major re-layout: 9 full-width, lane-aligned (64, 128) copies
    # u2[p, k*128 + b*C_IN + ci] = umid[k*HW + p, b*C_IN + ci]
    for k in range(K9):                                            # static
        u2_ref[:, k * BC:(k + 1) * BC] = umid_ref[k * HW_OUT:(k + 1) * HW_OUT, :]

    # ---- stage 3: conv taps (+ folded BN scale) in ONE natural matmul --------
    # y[p, b*C_OUT+co] = sum_{k,ci} u2[p, k*128+b*64+ci] * W_bd[k*128+b*64+ci, b*64+co]
    y = jnp.dot(u2_ref[...], w_ref[...],
                preferred_element_type=jnp.float32)               # (64, 128)
    o_ref[...] = jnp.maximum(y + bias_ref[...], 0.0)              # bias + ReLU


# ----------------------------- glue: operators --------------------------------
def bilinear_matrix(in_size, out_size):
    """PyTorch Upsample(mode='bilinear', align_corners=False) as a matrix."""
    R = np.zeros((out_size, in_size), dtype=np.float32)
    scale = in_size / out_size
    for i in range(out_size):
        src = (i + 0.5) * scale - 0.5
        if src < 0.0:
            src = 0.0
        i0 = min(int(np.floor(src)), in_size - 1)
        i1 = min(i0 + 1, in_size - 1)
        lam = src - i0
        R[i, i0] += 1.0 - lam
        R[i, i1] += lam
    return R


def build_resize_taps():
    """9 shifted bilinear-resize operators, stacked k-major -> (9*HW, N_TOK)."""
    Rh = bilinear_matrix(H_TOK, H_OUT)
    Rw = bilinear_matrix(W_TOK, W_OUT)
    R_full = np.kron(Rh, Rw)                              # (HW_OUT, N_TOK)
    S = np.zeros((K9, HW_OUT, N_TOK), dtype=np.float32)
    for kh in range(3):
        for kw in range(3):
            k = kh * 3 + kw
            for i in range(H_OUT):
                ii = i + kh - 1
                if ii < 0 or ii >= H_OUT:
                    continue
                for j in range(W_OUT):
                    jj = j + kw - 1
                    if jj < 0 or jj >= W_OUT:
                        continue
                    S[k, i * W_OUT + j, :] = R_full[ii * W_OUT + jj, :]
    return S.reshape(K9 * HW_OUT, N_TOK), Rh, Rw


def init_params(key):
    ks = jax.random.split(key, 8)
    # pp_vit stand-in params
    w_pt = jax.random.normal(ks[0], (DP, C_IN), jnp.float32) * 0.1
    b_pt = jax.random.normal(ks[1], (1, C_IN), jnp.float32) * 0.01
    pos = jax.random.normal(ks[2], (N_TOK, C_IN), jnp.float32) * 0.02
    # proj: Conv2d(C_IN, C_OUT, 3, padding=1) + BatchNorm2d(C_OUT) (eval)
    conv_w = jax.random.normal(ks[3], (C_OUT, C_IN, 3, 3), jnp.float32) * 0.05
    conv_b = jax.random.normal(ks[4], (C_OUT,), jnp.float32) * 0.01
    gamma = 1.0 + 0.1 * jax.random.normal(ks[5], (C_OUT,), jnp.float32)
    beta = 0.1 * jax.random.normal(ks[6], (C_OUT,), jnp.float32)
    run_mean = 0.1 * jax.random.normal(ks[7], (C_OUT,), jnp.float32)
    run_var = jnp.ones((C_OUT,), jnp.float32) * 0.5

    # stacked resize taps (k-major rows): (9*HW_OUT, N_TOK)
    S_kmaj, Rh, Rw = build_resize_taps()

    # host-side numpy copies for operand construction
    w_pt_np = np.asarray(w_pt)
    b_pt_np = np.asarray(b_pt)
    pos_np = np.asarray(pos)
    conv_w_np = np.asarray(conv_w)
    conv_b_np = np.asarray(conv_b)
    gamma_np = np.asarray(gamma)
    beta_np = np.asarray(beta)
    mean_np = np.asarray(run_mean)
    var_np = np.asarray(run_var)

    # --- stage 1: batch-block-diagonal point embedding weight (8, 128) -------
    # rows = b*DP + d, cols = b*C_IN + c  (both batches packed along lanes)
    w_pt_bd = np.zeros((B * DP, B * C_IN), np.float32)
    for b in range(B):
        w_pt_bd[b * DP:(b + 1) * DP, b * C_IN:(b + 1) * C_IN] = w_pt_np
    b_pt_cat = np.tile(b_pt_np, (1, B))                   # (1, 128)
    pos2 = np.tile(pos_np, (1, B))                        # (16, 128)

    # --- stage 3: conv taps, k-major rows, batch-block-diag columns ----------
    # BN (eval) scale folded into the columns IN F32 before the bf16 cast.
    scale = gamma_np / np.sqrt(var_np + BN_EPS)
    bias = beta_np + (conv_b_np - mean_np) * scale
    w_taps = np.transpose(conv_w_np, (2, 3, 1, 0)).reshape(K9, C_IN, C_OUT)
    w_taps_scaled = w_taps * scale[None, None, :]         # fold BN scale (f32)
    W_bd = np.zeros((K9, B * C_IN, B * C_OUT), np.float32)
    for b in range(B):
        W_bd[:, b * C_IN:(b + 1) * C_IN, b * C_OUT:(b + 1) * C_OUT] = w_taps_scaled
    W_bd = W_bd.reshape(K9 * B * C_IN, B * C_OUT)         # row = k*128 + b*64 + ci
    bias_row = np.tile(bias, B).reshape(1, B * C_OUT)     # (1, 128)

    return dict(
        # kernel operands (MXU operands in bf16, epilogue operands in f32)
        w_pt_bd=jnp.asarray(w_pt_bd, jnp.bfloat16),        # (8, 128)
        b_pt_cat=jnp.asarray(b_pt_cat, jnp.float32),       # (1, 128)
        pos2=jnp.asarray(pos2, jnp.float32),               # (16, 128)
        S=jnp.asarray(S_kmaj, jnp.bfloat16),               # (576, 16)
        W_bd=jnp.asarray(W_bd, jnp.bfloat16),              # (1152, 128)
        bias_row=jnp.asarray(bias_row, jnp.float32),       # (1, 128)
        # raw params for the pure-JAX reference check
        raw=dict(w_pt=w_pt, b_pt=b_pt, pos=pos, conv_w=conv_w, conv_b=conv_b,
                 gamma=gamma, beta=beta, mean=run_mean, var=run_var,
                 Rh=jnp.asarray(Rh), Rw=jnp.asarray(Rw)),
    )


# ----------------------------- pallas_call wrapper ----------------------------
_VMEM_SPEC = pl.BlockSpec(memory_space=pltpu.MemorySpace.VMEM)


@jax.jit
def point_pillars_vit_cnn(points, params):
    # host/XLA-side packing of the 8 KB point cloud: (B, P, DP) -> (P, B*DP),
    # bf16 (lane-packed batches; free at this size).
    pts_packed = jnp.transpose(points, (1, 0, 2)).reshape(P, B * DP)
    pts_packed = pts_packed.astype(jnp.bfloat16)

    # single fused kernel, no grid: at ~20 MFLOP / <1 MiB VMEM the kernel is
    # dispatch-bound, so fewer steps beats splitting B=2 across TensorCores.
    out = pl.pallas_call(
        fused_kernel,
        out_shape=jax.ShapeDtypeStruct((HW_OUT, B * C_OUT), jnp.float32),
        in_specs=[_VMEM_SPEC] * 7,
        out_specs=_VMEM_SPEC,
        scratch_shapes=[
            pltpu.VMEM((K9 * HW_OUT, B * C_IN), jnp.bfloat16),   # umid (576, 128)
            pltpu.VMEM((HW_OUT, B * K9 * C_IN), jnp.bfloat16),   # u2   (64, 1152)
        ],
    )(pts_packed, params["w_pt_bd"], params["b_pt_cat"], params["pos2"],
      params["S"], params["W_bd"], params["bias_row"])

    # kernel emits a lane-dense (HW, B*C_out) slab; NCHW needs only a tiny
    # (32 KB) XLA transpose outside the kernel.
    return jnp.transpose(out.reshape(H_OUT, W_OUT, B, C_OUT), (2, 3, 0, 1))


# ----------------------------- pure-JAX reference -----------------------------
def reference_forward(points, raw):
    f = jnp.maximum(jnp.einsum("bpd,dc->bpc", points, raw["w_pt"]) + raw["b_pt"],
                    0.0)
    g = jnp.max(f, axis=1, keepdims=True)
    tok = raw["pos"][None] + g                                    # (B, N, C)
    x = jnp.transpose(tok, (0, 2, 1)).reshape(B, C_IN, H_TOK, W_TOK)
    xu = jnp.einsum("Hh,Ww,bchw->bcHW", raw["Rh"], raw["Rw"], x)  # bilinear up
    z = jax.lax.conv_general_dilated(
        xu, raw["conv_w"], window_strides=(1, 1), padding=((1, 1), (1, 1)),
        dimension_numbers=("NCHW", "OIHW", "NCHW"))
    z = z + raw["conv_b"][None, :, None, None]
    inv = jax.lax.rsqrt(raw["var"] + BN_EPS)
    z = (raw["gamma"] * inv)[None, :, None, None] * \
        (z - raw["mean"][None, :, None, None]) + raw["beta"][None, :, None, None]
    return jnp.maximum(z, 0.0)


# ------------------------------------ main ------------------------------------
if __name__ == "__main__":
    key = jax.random.PRNGKey(0)
    k_pts, k_par = jax.random.split(key)
    points = jax.random.normal(k_pts, (B, P, DP), jnp.float32)
    params = init_params(k_par)

    out = point_pillars_vit_cnn(points, params)
    jax.block_until_ready(out)
    assert out.shape == (B, C_OUT, H_OUT, W_OUT), out.shape

    # correctness vs. pure-JAX reference (bf16 MXU operands -> loose tolerance)
    ref = reference_forward(points, params["raw"])
    err = float(jnp.max(jnp.abs(out - ref)))
    ref_scale = float(jnp.max(jnp.abs(ref)))
    assert err < 1e-1, (
        f"kernel/reference mismatch: max|err|={err}, rel={err / max(ref_scale, 1e-6)}")

    print("KERNEL_OK")
</pallas_src>

<mosaic_0001>
module attributes {stable_mosaic.version = 11 : i64} {
  func.func @fused_kernel(%arg0: memref<256x8xbf16, #tpu.memory_space<vmem>>, %arg1: memref<8x128xbf16, #tpu.memory_space<vmem>>, %arg2: memref<1x128xf32, #tpu.memory_space<vmem>>, %arg3: memref<16x128xf32, #tpu.memory_space<vmem>>, %arg4: memref<576x16xbf16, #tpu.memory_space<vmem>>, %arg5: memref<1152x128xbf16, #tpu.memory_space<vmem>>, %arg6: memref<1x128xf32, #tpu.memory_space<vmem>>, %arg7: memref<64x128xf32, #tpu.memory_space<vmem>>, %arg8: memref<576x128xbf16, #tpu.memory_space<vmem>>, %arg9: memref<64x1152xbf16, #tpu.memory_space<vmem>>) attributes {dimension_semantics = [], scalar_prefetch = 0 : i64, scratch_operands = 2 : i64, tpu.core_type = #tpu.core_type<tc>} {
    %c0 = arith.constant 0 : index
    %c0_0 = arith.constant 0 : index
    %0 = vector.load %arg0[%c0, %c0_0] : memref<256x8xbf16, #tpu.memory_space<vmem>>, vector<256x8xbf16>
    %c0_1 = arith.constant 0 : index
    %c0_2 = arith.constant 0 : index
    %1 = vector.load %arg1[%c0_1, %c0_2] : memref<8x128xbf16, #tpu.memory_space<vmem>>, vector<8x128xbf16>
    %cst = arith.constant dense<0.000000e+00> : vector<256x128xf32>
    %2 = tpu.matmul %0, %1, %cst {dimension_numbers = #tpu.dot_dimension_numbers<[1], [0], [0], [1], [0, 0, 1, 1], [], []>} : vector<256x8xbf16>, vector<8x128xbf16>, vector<256x128xf32> -> vector<256x128xf32>
    %c0_3 = arith.constant 0 : index
    %c0_4 = arith.constant 0 : index
    %3 = vector.load %arg2[%c0_3, %c0_4] : memref<1x128xf32, #tpu.memory_space<vmem>>, vector<1x128xf32>
    %4 = vector.broadcast %3 : vector<1x128xf32> to vector<256x128xf32>
    %5 = arith.addf %2, %4 : vector<256x128xf32>
    %cst_5 = arith.constant 0.000000e+00 : f32
    %6 = vector.broadcast %cst_5 : f32 to vector<256x128xf32>
    %7 = arith.maximumf %5, %6 : vector<256x128xf32>
    %cst_6 = arith.constant dense<0xFF800000> : vector<128xf32>
    %8 = vector.multi_reduction <maximumf>, %7, %cst_6 [0] : vector<256x128xf32> to vector<128xf32>
    %9 = vector.shape_cast %8 : vector<128xf32> to vector<1x128xf32>
    %c0_7 = arith.constant 0 : index
    %c0_8 = arith.constant 0 : index
    %10 = vector.load %arg3[%c0_7, %c0_8] : memref<16x128xf32, #tpu.memory_space<vmem>>, vector<16x128xf32>
    %11 = vector.broadcast %9 : vector<1x128xf32> to vector<16x128xf32>
    %12 = arith.addf %10, %11 : vector<16x128xf32>
    %13 = arith.truncf %12 : vector<16x128xf32> to vector<16x128xbf16>
    %c0_9 = arith.constant 0 : index
    %c0_10 = arith.constant 0 : index
    %14 = vector.load %arg4[%c0_9, %c0_10] : memref<576x16xbf16, #tpu.memory_space<vmem>>, vector<576x16xbf16>
    %cst_11 = arith.constant dense<0.000000e+00> : vector<576x128xf32>
    %15 = tpu.matmul %14, %13, %cst_11 {dimension_numbers = #tpu.dot_dimension_numbers<[1], [0], [0], [1], [0, 0, 1, 1], [], []>} : vector<576x16xbf16>, vector<16x128xbf16>, vector<576x128xf32> -> vector<576x128xf32>
    %16 = arith.truncf %15 : vector<576x128xf32> to vector<576x128xbf16>
    %c0_12 = arith.constant 0 : index
    %c0_13 = arith.constant 0 : index
    %17 = vector.load %arg8[%c0_12, %c0_13] : memref<576x128xbf16, #tpu.memory_space<vmem>>, vector<576x128xbf16>
    tpu.vector_store %arg8[%c0_12, %c0_13], %16 {strides = array<i32>} : memref<576x128xbf16, #tpu.memory_space<vmem>>, vector<576x128xbf16>,
    %c0_14 = arith.constant 0 : index
    %c0_15 = arith.constant 0 : index
    %18 = vector.load %arg8[%c0_14, %c0_15] : memref<576x128xbf16, #tpu.memory_space<vmem>>, vector<64x128xbf16>
    %c0_16 = arith.constant 0 : index
    %c0_17 = arith.constant 0 : index
    %19 = vector.load %arg9[%c0_16, %c0_17] : memref<64x1152xbf16, #tpu.memory_space<vmem>>, vector<64x128xbf16>
    tpu.vector_store %arg9[%c0_16, %c0_17], %18 {strides = array<i32>} : memref<64x1152xbf16, #tpu.memory_space<vmem>>, vector<64x128xbf16>,
    %c64 = arith.constant 64 : index
    %c0_18 = arith.constant 0 : index
    %20 = vector.load %arg8[%c64, %c0_18] : memref<576x128xbf16, #tpu.memory_space<vmem>>, vector<64x128xbf16>
    %c0_19 = arith.constant 0 : index
    %c128 = arith.constant 128 : index
    %21 = vector.load %arg9[%c0_19, %c128] : memref<64x1152xbf16, #tpu.memory_space<vmem>>, vector<64x128xbf16>
    tpu.vector_store %arg9[%c0_19, %c128], %20 {strides = array<i32>} : memref<64x1152xbf16, #tpu.memory_space<vmem>>, vector<64x128xbf16>,
    %c128_20 = arith.constant 128 : index
    %c0_21 = arith.constant 0 : index
    %22 = vector.load %arg8[%c128_20, %c0_21] : memref<576x128xbf16, #tpu.memory_space<vmem>>, vector<64x128xbf16>
    %c0_22 = arith.constant 0 : index
    %c256 = arith.constant 256 : index
    %23 = vector.load %arg9[%c0_22, %c256] : memref<64x1152xbf16, #tpu.memory_space<vmem>>, vector<64x128xbf16>
    tpu.vector_store %arg9[%c0_22, %c256], %22 {strides = array<i32>} : memref<64x1152xbf16, #tpu.memory_space<vmem>>, vector<64x128xbf16>,
    %c192 = arith.constant 192 : index
    %c0_23 = arith.constant 0 : index
    %24 = vector.load %arg8[%c192, %c0_23] : memref<576x128xbf16, #tpu.memory_space<vmem>>, vector<64x128xbf16>
    %c0_24 = arith.constant 0 : index
    %c384 = arith.constant 384 : index
    %25 = vector.load %arg9[%c0_24, %c384] : memref<64x1152xbf16, #tpu.memory_space<vmem>>, vector<64x128xbf16>
    tpu.vector_store %arg9[%c0_24, %c384], %24 {strides = array<i32>} : memref<64x1152xbf16, #tpu.memory_space<vmem>>, vector<64x128xbf16>,
    %c256_25 = arith.constant 256 : index
    %c0_26 = arith.constant 0 : index
    %26 = vector.load %arg8[%c256_25, %c0_26] : memref<576x128xbf16, #tpu.memory_space<vmem>>, vector<64x128xbf16>
    %c0_27 = arith.constant 0 : index
    %c512 = arith.constant 512 : index
    %27 = vector.load %arg9[%c0_27, %c512] : memref<64x1152xbf16, #tpu.memory_space<vmem>>, vector<64x128xbf16>
    tpu.vector_store %arg9[%c0_27, %c512], %26 {strides = array<i32>} : memref<64x1152xbf16, #tpu.memory_space<vmem>>, vector<64x128xbf16>,
    %c320 = arith.constant 320 : index
    %c0_28 = arith.constant 0 : index
    %28 = vector.load %arg8[%c320, %c0_28] : memref<576x128xbf16, #tpu.memory_space<vmem>>, vector<64x128xbf16>
    %c0_29 = arith.constant 0 : index
    %c640 = arith.constant 640 : index
    %29 = vector.load %arg9[%c0_29, %c640] : memref<64x1152xbf16, #tpu.memory_space<vmem>>, vector<64x128xbf16>
    tpu.vector_store %arg9[%c0_29, %c640], %28 {strides = array<i32>} : memref<64x1152xbf16, #tpu.memory_space<vmem>>, vector<64x128xbf16>,
    %c384_30 = arith.constant 384 : index
    %c0_31 = arith.constant 0 : index
    %30 = vector.load %arg8[%c384_30, %c0_31] : memref<576x128xbf16, #tpu.memory_space<vmem>>, vector<64x128xbf16>
    %c0_32 = arith.constant 0 : index
    %c768 = arith.constant 768 : index
    %31 = vector.load %arg9[%c0_32, %c768] : memref<64x1152xbf16, #tpu.memory_space<vmem>>, vector<64x128xbf16>
    tpu.vector_store %arg9[%c0_32, %c768], %30 {strides = array<i32>} : memref<64x1152xbf16, #tpu.memory_space<vmem>>, vector<64x128xbf16>,
    %c448 = arith.constant 448 : index
    %c0_33 = arith.constant 0 : index
    %32 = vector.load %arg8[%c448, %c0_33] : memref<576x128xbf16, #tpu.memory_space<vmem>>, vector<64x128xbf16>
    %c0_34 = arith.constant 0 : index
    %c896 = arith.constant 896 : index
    %33 = vector.load %arg9[%c0_34, %c896] : memref<64x1152xbf16, #tpu.memory_space<vmem>>, vector<64x128xbf16>
    tpu.vector_store %arg9[%c0_34, %c896], %32 {strides = array<i32>} : memref<64x1152xbf16, #tpu.memory_space<vmem>>, vector<64x128xbf16>,
    %c512_35 = arith.constant 512 : index
    %c0_36 = arith.constant 0 : index
    %34 = vector.load %arg8[%c512_35, %c0_36] : memref<576x128xbf16, #tpu.memory_space<vmem>>, vector<64x128xbf16>
    %c0_37 = arith.constant 0 : index
    %c1024 = arith.constant 1024 : index
    %35 = vector.load %arg9[%c0_37, %c1024] : memref<64x1152xbf16, #tpu.memory_space<vmem>>, vector<64x128xbf16>
    tpu.vector_store %arg9[%c0_37, %c1024], %34 {strides = array<i32>} : memref<64x1152xbf16, #tpu.memory_space<vmem>>, vector<64x128xbf16>,
    %c0_38 = arith.constant 0 : index
    %c0_39 = arith.constant 0 : index
    %36 = vector.load %arg9[%c0_38, %c0_39] : memref<64x1152xbf16, #tpu.memory_space<vmem>>, vector<64x1152xbf16>
    %c0_40 = arith.constant 0 : index
    %c0_41 = arith.constant 0 : index
    %37 = vector.load %arg5[%c0_40, %c0_41] : memref<1152x128xbf16, #tpu.memory_space<vmem>>, vector<1152x128xbf16>
    %cst_42 = arith.constant dense<0.000000e+00> : vector<64x128xf32>
    %38 = tpu.matmul %36, %37, %cst_42 {dimension_numbers = #tpu.dot_dimension_numbers<[1], [0], [0], [1], [0, 0, 1, 1], [], []>} : vector<64x1152xbf16>, vector<1152x128xbf16>, vector<64x128xf32> -> vector<64x128xf32>
    %c0_43 = arith.constant 0 : index
    %c0_44 = arith.constant 0 : index
    %39 = vector.load %arg6[%c0_43, %c0_44] : memref<1x128xf32, #tpu.memory_space<vmem>>, vector<1x128xf32>
    %40 = vector.broadcast %39 : vector<1x128xf32> to vector<64x128xf32>
    %41 = arith.addf %38, %40 : vector<64x128xf32>
    %cst_45 = arith.constant 0.000000e+00 : f32
    %42 = vector.broadcast %cst_45 : f32 to vector<64x128xf32>
    %43 = arith.maximumf %41, %42 : vector<64x128xf32>
    %c0_46 = arith.constant 0 : index
    %c0_47 = arith.constant 0 : index
    %44 = vector.load %arg7[%c0_46, %c0_47] : memref<64x128xf32, #tpu.memory_space<vmem>>, vector<64x128xf32>
    tpu.vector_store %arg7[%c0_46, %c0_47], %43 {strides = array<i32>} : memref<64x128xf32, #tpu.memory_space<vmem>>, vector<64x128xf32>,
    return
  }
}

</mosaic_0001>

<llo_original>
// kernel: point_pillars_vit_cnn.1
$region0: #{point_pillars_vit_cnn.1}
  #allocation0 [shape = 'u32[]', space=smem, size = 0x4, offset = 0x4, fixed_abs, tag = 'smem constant byte address 0x4 - core index']
  #allocation1 [shape = 'u32[144,128]{1,0:T(1,128)}', space=vmem, size = 0x12000, scoped, tag = 'internal scratch']
  #allocation2 [shape = 'bf16[576,128]{1,0:T(16,128)(2,1)}', space=vmem, size = 0x24000, scoped, tag = 'scratch operand']
  #allocation3 [shape = 'bf16[64,1152]{1,0:T(16,128)(2,1)}', space=vmem, size = 0x24000, scoped, tag = 'scratch operand']
  %s0 = inlined_call_operand.vmem [shape: bf16[256,8], index: 0, kind: input, shape index: {}]
  %s1 = inlined_call_operand.vmem [shape: bf16[8,128], index: 1, kind: input, shape index: {}]
  %s2 = inlined_call_operand.vmem [shape: f32[1,128], index: 2, kind: input, shape index: {}]
  %s3 = inlined_call_operand.vmem [shape: f32[16,128], index: 3, kind: input, shape index: {}]
  %s4 = inlined_call_operand.vmem [shape: bf16[576,16], index: 4, kind: input, shape index: {}]
  %s5 = inlined_call_operand.hbm [shape: bf16[1152,128], index: 5, kind: input, shape index: {}]
  %s6 = inlined_call_operand.vmem [shape: f32[1,128], index: 6, kind: input, shape index: {}]
  %s7 = inlined_call_operand.vmem [shape: f32[64,128], index: 7, kind: output, shape index: {}]
  %s8 = sld [smem:[#allocation0]]
  $region42: #{point_pillars_vit_cnn.1} parent=0
    _
  %s10 = ssub.s32 1, %s8
  %s11 = scalar_select 0, %s10, %s8
  $region1: #{point_pillars_vit_cnn.1} parent=0
    #allocation4 [shape = 'u8[294912]{0}', space=vmem, size = 0x48000, scoped, tag = 'input window, operand 5, single buffered']
    #allocation5 [shape = 's32[1]{0}', space=sflag, size = 0x4, scoped, tag = 'scoped memory for point_pillars_vit_cnn.1']
    %12 = vsyncpa [#allocation5], 0
    // Predicated region
    $region2: #{point_pillars_vit_cnn.1} parent=1 // pred_check
      _
    $region3: #{point_pillars_vit_cnn.1} parent=1 // pred_check_branch
      %14 = sbr.rel (0) target = $region5
    $region4: #{point_pillars_vit_cnn.1} parent=1 // pred_region
      _
    $region5: #{point_pillars_vit_cnn.1} parent=1 // pred_fallthru
      _
    // Predicated region
    $region6: #{point_pillars_vit_cnn.1} parent=1 // pred_check
      _
    $region7: #{point_pillars_vit_cnn.1} parent=1 // pred_check_branch
      %16 = sbr.rel (0) target = $region9
    $region8: #{point_pillars_vit_cnn.1} parent=1 // pred_region
      _
    $region9: #{point_pillars_vit_cnn.1} parent=1 // pred_fallthru
      _
    // Predicated region
    $region10: #{point_pillars_vit_cnn.1} parent=1 // pred_check
      _
    $region11: #{point_pillars_vit_cnn.1} parent=1 // pred_check_branch
      %18 = sbr.rel (0) target = $region13
    $region12: #{point_pillars_vit_cnn.1} parent=1 // pred_region
      _
    $region13: #{point_pillars_vit_cnn.1} parent=1 // pred_fallthru
      _
    // Predicated region
    $region14: #{point_pillars_vit_cnn.1} parent=1 // pred_check
      _
    $region15: #{point_pillars_vit_cnn.1} parent=1 // pred_check_branch
      %20 = sbr.rel (0) target = $region17
    $region16: #{point_pillars_vit_cnn.1} parent=1 // pred_region
      _
    $region17: #{point_pillars_vit_cnn.1} parent=1 // pred_fallthru
      _
    // Predicated region
    $region18: #{point_pillars_vit_cnn.1} parent=1 // pred_check
      _
    $region19: #{point_pillars_vit_cnn.1} parent=1 // pred_check_branch
      %22 = sbr.rel (0) target = $region21
    $region20: #{point_pillars_vit_cnn.1} parent=1 // pred_region
      _
    $region21: #{point_pillars_vit_cnn.1} parent=1 // pred_fallthru
      _
    // Predicated region
    $region22: #{point_pillars_vit_cnn.1} parent=1 // pred_check
      _
    $region23: #{point_pillars_vit_cnn.1} parent=1 // pred_check_branch
      %24 = sbr.rel (0) target = $region25
    $region24: #{point_pillars_vit_cnn.1} parent=1 // pred_region
      %s26 = ssub.s32 9216, 9216
      %27 = vsyncadd [#allocation5], %s26
      %s28 = sshll.u32 [#allocation4], 4
      %s29 = int_to_ptr.vmem [resolvable:$true] %s28
      %34 = dma.hbm_to_vmem [thread:$0]  %s5, 9216, %s29, [#allocation5], 64, 64, 4
    $region25: #{point_pillars_vit_cnn.1} parent=1 // pred_fallthru
      _
    // Predicated region
    $region26: #{point_pillars_vit_cnn.1} parent=1 // pred_check
      _
    $region27: #{point_pillars_vit_cnn.1} parent=1 // pred_check_branch
      %36 = sbr.rel (0) target = $region29
    $region28: #{point_pillars_vit_cnn.1} parent=1 // pred_region
      _
    $region29: #{point_pillars_vit_cnn.1} parent=1 // pred_fallthru
      _
    // Predicated region
    $region30: #{point_pillars_vit_cnn.1} parent=1 // pred_check
      _
    $region31: #{point_pillars_vit_cnn.1} parent=1 // pred_check_branch
      %38 = sbr.rel (0) target = $region33
    $region32: #{point_pillars_vit_cnn.1} parent=1 // pred_region
      %39 = dma.done [#allocation5], 9216
    $region33: #{point_pillars_vit_cnn.1} parent=1 // pred_fallthru
      _
    %v41 = vld [vmem:[%s0] sm:$0xf]
    %v42 = vld [vmem:[%s0 + $0x4] sm:$0xf]
    %v43 = vld [vmem:[%s0 + $0x8] sm:$0xf]
    %v44 = vld [vmem:[%s0 + $0xc] sm:$0xf]
    %v45 = vld [vmem:[%s0 + $0x10] sm:$0xf]
    %v46 = vld [vmem:[%s0 + $0x14] sm:$0xf]
    %v47 = vld [vmem:[%s0 + $0x18] sm:$0xf]
    %v48 = vld [vmem:[%s0 + $0x1c] sm:$0xf]
    %v49 = vld [vmem:[%s0 + $0x20] sm:$0xf]
    %v50 = vld [vmem:[%s0 + $0x24] sm:$0xf]
    %v51 = vld [vmem:[%s0 + $0x28] sm:$0xf]
    %v52 = vld [vmem:[%s0 + $0x2c] sm:$0xf]
    %v53 = vld [vmem:[%s0 + $0x30] sm:$0xf]
    %v54 = vld [vmem:[%s0 + $0x34] sm:$0xf]
    %v55 = vld [vmem:[%s0 + $0x38] sm:$0xf]
    %v56 = vld [vmem:[%s0 + $0x3c] sm:$0xf]
    %v57 = vld [vmem:[%s0 + $0x40] sm:$0xf]
    %v58 = vld [vmem:[%s0 + $0x44] sm:$0xf]
    %v59 = vld [vmem:[%s0 + $0x48] sm:$0xf]
    %v60 = vld [vmem:[%s0 + $0x4c] sm:$0xf]
    %v61 = vld [vmem:[%s0 + $0x50] sm:$0xf]
    %v62 = vld [vmem:[%s0 + $0x54] sm:$0xf]
    %v63 = vld [vmem:[%s0 + $0x58] sm:$0xf]
    %v64 = vld [vmem:[%s0 + $0x5c] sm:$0xf]
    %v65 = vld [vmem:[%s0 + $0x60] sm:$0xf]
    %v66 = vld [vmem:[%s0 + $0x64] sm:$0xf]
    %v67 = vld [vmem:[%s0 + $0x68] sm:$0xf]
    %v68 = vld [vmem:[%s0 + $0x6c] sm:$0xf]
    %v69 = vld [vmem:[%s0 + $0x70] sm:$0xf]
    %v70 = vld [vmem:[%s0 + $0x74] sm:$0xf]
    %v71 = vld [vmem:[%s0 + $0x78] sm:$0xf]
    %v72 = vld [vmem:[%s0 + $0x7c] sm:$0xf]
    %v73 = vld [vmem:[%s1] sm:$0xf]
    %v74 = vld [vmem:[%s2] sm:$0x1]
    %v76 = vlaneseq
    %v77 = vshrl.u32 %v76, 7
    %v78 = vsub.s32 0, %v77
    %v79 = vrot.slane %v74, %v78
    %v113 = vunpack.c.l.b16 %v41
    %v114 = vunpack.c.l.b16 %v42
    %v115 = vunpack.c.l.b16 %v43
    %v116 = vunpack.c.l.b16 %v44
    %v117 = vunpack.c.l.b16 %v45
    %v118 = vunpack.c.l.b16 %v46
    %v119 = vunpack.c.l.b16 %v47
    %v120 = vunpack.c.l.b16 %v48
    %v121 = vunpack.c.l.b16 %v49
    %v122 = vunpack.c.l.b16 %v50
    %v123 = vunpack.c.l.b16 %v51
    %v124 = vunpack.c.l.b16 %v52
    %v125 = vunpack.c.l.b16 %v53
    %v126 = vunpack.c.l.b16 %v54
    %v127 = vunpack.c.l.b16 %v55
    %v128 = vunpack.c.l.b16 %v56
    %v129 = vunpack.c.l.b16 %v57
    %v130 = vunpack.c.l.b16 %v58
    %v131 = vunpack.c.l.b16 %v59
    %v132 = vunpack.c.l.b16 %v60
    %v133 = vunpack.c.l.b16 %v61
    %v134 = vunpack.c.l.b16 %v62
    %v135 = vunpack.c.l.b16 %v63
    %v136 = vunpack.c.l.b16 %v64
    %v137 = vunpack.c.l.b16 %v65
    %v138 = vunpack.c.l.b16 %v66
    %v139 = vunpack.c.l.b16 %v67
    %v140 = vunpack.c.l.b16 %v68
    %v141 = vunpack.c.l.b16 %v69
    %v142 = vunpack.c.l.b16 %v70
    %v143 = vunpack.c.l.b16 %v71
    %v144 = vunpack.c.l.b16 %v72
    %v145 = vpack.c.b16 %v114, %v113
    %v146 = vpack.c.b16 %v116, %v115
    %v147 = vpack.c.b16 %v118, %v117
    %v148 = vpack.c.b16 %v120, %v119
    %v149 = vpack.c.b16 %v122, %v121
    %v150 = vpack.c.b16 %v124, %v123
    %v151 = vpack.c.b16 %v126, %v125
    %v152 = vpack.c.b16 %v128, %v127
    %v153 = vpack.c.b16 %v130, %v129
    %v154 = vpack.c.b16 %v132, %v131
    %v155 = vpack.c.b16 %v134, %v133
    %v156 = vpack.c.b16 %v136, %v135
    %v157 = vpack.c.b16 %v138, %v137
    %v158 = vpack.c.b16 %v140, %v139
    %v159 = vpack.c.b16 %v142, %v141
    %v160 = vpack.c.b16 %v144, %v143
    %vm161 = vcmask 64512
    %v163 = vsel %vm161, %v145, 0
    %v166 = vsel %vm161, %v146, 0
    %v169 = vsel %vm161, %v147, 0
    %v172 = vsel %vm161, %v148, 0
    %v175 = vsel %vm161, %v149, 0
    %v178 = vsel %vm161, %v150, 0
    %v181 = vsel %vm161, %v151, 0
    %v184 = vsel %vm161, %v152, 0
    %v187 = vsel %vm161, %v153, 0
    %v190 = vsel %vm161, %v154, 0
    %v193 = vsel %vm161, %v155, 0
    %v196 = vsel %vm161, %v156, 0
    %v199 = vsel %vm161, %v157, 0
    %v202 = vsel %vm161, %v158, 0
    %v205 = vsel %vm161, %v159, 0
    %v208 = vsel %vm161, %v160, 0
    %vm210 = vcmask 1043456
    %v212 = vsel %vm210, %v73, 0
    %214 = vmatprep.subr.bf16.mxu0 0
    %215 = vmatpush1.bf16.msra.mxu0 %v212
    %216 = vmatprep.subr.bf16.mxu0 0
    %217 = vmatpush1.bf16.msra.mxu0 0
    %218 = vmatprep.subr.bf16.mxu0 0
    %219 = vmatpush1.bf16.msra.mxu0 0
    %220 = vmatprep.subr.bf16.mxu0 0
    %221 = vmatpush1.bf16.msra.mxu0 0
    %222 = vmatprep.subr.bf16.mxu0 0
    %223 = vmatpush1.bf16.msra.mxu0 0
    %224 = vmatprep.subr.bf16.mxu0 0
    %225 = vmatpush1.bf16.msra.mxu0 0
    %226 = vmatprep.subr.bf16.mxu0 0
    %227 = vmatpush1.bf16.msra.mxu0 0
    %228 = vmatprep.subr.bf16.mxu0 0
    %229 = vmatpush1.bf16.msra.mxu0 0
    %230 = vmatprep.subr.bf16.mxu0 0
    %231 = vmatpush1.bf16.msra.mxu0 0
    %232 = vmatprep.subr.bf16.mxu0 0
    %233 = vmatpush1.bf16.msra.mxu0 0
    %234 = vmatprep.subr.bf16.mxu0 0
    %235 = vmatpush1.bf16.msra.mxu0 0
    %236 = vmatprep.subr.bf16.mxu0 0
    %237 = vmatpush1.bf16.msra.mxu0 0
    %238 = vmatprep.subr.bf16.mxu0 0
    %239 = vmatpush1.bf16.msra.mxu0 0
    %240 = vmatprep.subr.bf16.mxu0 0
    %241 = vmatpush1.bf16.msra.mxu0 0
    %242 = vmatprep.subr.bf16.mxu0 0
    %243 = vmatpush1.bf16.msra.mxu0 0
    %244 = vmatprep.subr.bf16.mxu0 0
    %245 = vmatpush1.bf16.msra.mxu0 0
    %246 = vmatprep.mubr.bf16.mxu0 0
    %247 = vmatmul.mubr.bf16.gmra.mrb[0].mxu0 %v163
    %v248 = vpop.f32.mrb[0].mxu0
    %v249 = vadd.f32 %v79, %v248
    %v250 = vpop.f32.mrb[0].mxu0
    %v251 = vpop.f32.mrb[0].mxu0
    %v252 = vadd.f32 %v79, %v251
    %v253 = vpop.f32.mrb[0].mxu0
    %254 = vmatprep.mubr.bf16.mxu0 0
    %255 = vmatmul.mubr.bf16.gmra.mrb[0].mxu0 %v166
    %v256 = vpop.f32.mrb[0].mxu0
    %v257 = vadd.f32 %v79, %v256
    %v258 = vpop.f32.mrb[0].mxu0
    %v259 = vpop.f32.mrb[0].mxu0
    %v260 = vadd.f32 %v79, %v259
    %v261 = vpop.f32.mrb[0].mxu0
    %262 = vmatprep.mubr.bf16.mxu0 0
    %263 = vmatmul.mubr.bf16.gmra.mrb[0].mxu0 %v169
    %v264 = vpop.f32.mrb[0].mxu0
    %v265 = vadd.f32 %v79, %v264
    %v266 = vpop.f32.mrb[0].mxu0
    %v267 = vpop.f32.mrb[0].mxu0
    %v268 = vadd.f32 %v79, %v267
    %v269 = vpop.f32.mrb[0].mxu0
    %270 = vmatprep.mubr.bf16.mxu0 0
    %271 = vmatmul.mubr.bf16.gmra.mrb[0].mxu0 %v172
    %v272 = vpop.f32.mrb[0].mxu0
    %v273 = vadd.f32 %v79, %v272
    %v274 = vpop.f32.mrb[0].mxu0
    %v275 = vpop.f32.mrb[0].mxu0
    %v276 = vadd.f32 %v79, %v275
    %v277 = vpop.f32.mrb[0].mxu0
    %278 = vmatprep.mubr.bf16.mxu0 0
    %279 = vmatmul.mubr.bf16.gmra.mrb[0].mxu0 %v175
    %v280 = vpop.f32.mrb[0].mxu0
    %v281 = vadd.f32 %v79, %v280
    %v282 = vpop.f32.mrb[0].mxu0
    %v283 = vpop.f32.mrb[0].mxu0
    %v284 = vadd.f32 %v79, %v283
    %v285 = vpop.f32.mrb[0].mxu0
    %286 = vmatprep.mubr.bf16.mxu0 0
    %287 = vmatmul.mubr.bf16.gmra.mrb[0].mxu0 %v178
    %v288 = vpop.f32.mrb[0].mxu0
    %v289 = vadd.f32 %v79, %v288
    %v290 = vpop.f32.mrb[0].mxu0
    %v291 = vpop.f32.mrb[0].mxu0
    %v292 = vadd.f32 %v79, %v291
    %v293 = vpop.f32.mrb[0].mxu0
    %294 = vmatprep.mubr.bf16.mxu0 0
    %295 = vmatmul.mubr.bf16.gmra.mrb[0].mxu0 %v181
    %v296 = vpop.f32.mrb[0].mxu0
    %v297 = vadd.f32 %v79, %v296
    %v298 = vpop.f32.mrb[0].mxu0
    %v299 = vpop.f32.mrb[0].mxu0
    %v300 = vadd.f32 %v79, %v299
    %v301 = vpop.f32.mrb[0].mxu0
    %302 = vmatprep.mubr.bf16.mxu0 0
    %303 = vmatmul.mubr.bf16.gmra.mrb[0].mxu0 %v184
    %v304 = vpop.f32.mrb[0].mxu0
    %v305 = vadd.f32 %v79, %v304
    %v306 = vpop.f32.mrb[0].mxu0
    %v307 = vpop.f32.mrb[0].mxu0
    %v308 = vadd.f32 %v79, %v307
    %v309 = vpop.f32.mrb[0].mxu0
    %310 = vmatprep.mubr.bf16.mxu0 0
    %311 = vmatmul.mubr.bf16.gmra.mrb[0].mxu0 %v187
    %v312 = vpop.f32.mrb[0].mxu0
    %v313 = vadd.f32 %v79, %v312
    %v314 = vpop.f32.mrb[0].mxu0
    %v315 = vpop.f32.mrb[0].mxu0
    %v316 = vadd.f32 %v79, %v315
    %v317 = vpop.f32.mrb[0].mxu0
    %318 = vmatprep.mubr.bf16.mxu0 0
    %319 = vmatmul.mubr.bf16.gmra.mrb[0].mxu0 %v190
    %v320 = vpop.f32.mrb[0].mxu0
    %v321 = vadd.f32 %v79, %v320
    %v322 = vpop.f32.mrb[0].mxu0
    %v323 = vpop.f32.mrb[0].mxu0
    %v324 = vadd.f32 %v79, %v323
    %v325 = vpop.f32.mrb[0].mxu0
    %326 = vmatprep.mubr.bf16.mxu0 0
    %327 = vmatmul.mubr.bf16.gmra.mrb[0].mxu0 %v193
    %v328 = vpop.f32.mrb[0].mxu0
    %v329 = vadd.f32 %v79, %v328
    %v330 = vpop.f32.mrb[0].mxu0
    %v331 = vpop.f32.mrb[0].mxu0
    %v332 = vadd.f32 %v79, %v331
    %v333 = vpop.f32.mrb[0].mxu0
    %334 = vmatprep.mubr.bf16.mxu0 0
    %335 = vmatmul.mubr.bf16.gmra.mrb[0].mxu0 %v196
    %v336 = vpop.f32.mrb[0].mxu0
    %v337 = vadd.f32 %v79, %v336
    %v338 = vpop.f32.mrb[0].mxu0
    %v339 = vpop.f32.mrb[0].mxu0
    %v340 = vadd.f32 %v79, %v339
    %v341 = vpop.f32.mrb[0].mxu0
    %342 = vmatprep.mubr.bf16.mxu0 0
    %343 = vmatmul.mubr.bf16.gmra.mrb[0].mxu0 %v199
    %v344 = vpop.f32.mrb[0].mxu0
    %v345 = vadd.f32 %v79, %v344
    %v346 = vpop.f32.mrb[0].mxu0
    %v347 = vpop.f32.mrb[0].mxu0
    %v348 = vadd.f32 %v79, %v347
    %v349 = vpop.f32.mrb[0].mxu0
    %350 = vmatprep.mubr.bf16.mxu0 0
    %351 = vmatmul.mubr.bf16.gmra.mrb[0].mxu0 %v202
    %v352 = vpop.f32.mrb[0].mxu0
    %v353 = vadd.f32 %v79, %v352
    %v354 = vpop.f32.mrb[0].mxu0
    %v355 = vpop.f32.mrb[0].mxu0
    %v356 = vadd.f32 %v79, %v355
    %v357 = vpop.f32.mrb[0].mxu0
    %358 = vmatprep.mubr.bf16.mxu0 0
    %359 = vmatmul.mubr.bf16.gmra.mrb[0].mxu0 %v205
    %v360 = vpop.f32.mrb[0].mxu0
    %v361 = vadd.f32 %v79, %v360
    %v362 = vpop.f32.mrb[0].mxu0
    %v363 = vpop.f32.mrb[0].mxu0
    %v364 = vadd.f32 %v79, %v363
    %v365 = vpop.f32.mrb[0].mxu0
    %366 = vmatprep.mubr.bf16.mxu0 0
    %367 = vmatmul.mubr.bf16.gmra.mrb[0].mxu0 %v208
    %v368 = vpop.f32.mrb[0].mxu0
    %v369 = vadd.f32 %v79, %v368
    %v370 = vpop.f32.mrb[0].mxu0
    %v371 = vpop.f32.mrb[0].mxu0
    %v372 = vadd.f32 %v79, %v371
    %v373 = vpop.f32.mrb[0].mxu0
    %374 = vdwg.mxu0
    %v375 = vmax.f32 %v249, 0.0
    %v376 = vmax.f32 %v252, 0.0
    %v377 = vmax.f32 %v257, 0.0
    %v378 = vmax.f32 %v260, 0.0
    %v379 = vmax.f32 %v265, 0.0
    %v380 = vmax.f32 %v268, 0.0
    %v381 = vmax.f32 %v273, 0.0
    %v382 = vmax.f32 %v276, 0.0
    %v383 = vmax.f32 %v281, 0.0
    %v384 = vmax.f32 %v284, 0.0
    %v385 = vmax.f32 %v289, 0.0
    %v386 = vmax.f32 %v292, 0.0
    %v387 = vmax.f32 %v297, 0.0
    %v388 = vmax.f32 %v300, 0.0
    %v389 = vmax.f32 %v305, 0.0
    %v390 = vmax.f32 %v308, 0.0
    %v391 = vmax.f32 %v313, 0.0
    %v392 = vmax.f32 %v316, 0.0
    %v393 = vmax.f32 %v321, 0.0
    %v394 = vmax.f32 %v324, 0.0
    %v395 = vmax.f32 %v329, 0.0
    %v396 = vmax.f32 %v332, 0.0
    %v397 = vmax.f32 %v337, 0.0
    %v398 = vmax.f32 %v340, 0.0
    %v399 = vmax.f32 %v345, 0.0
    %v400 = vmax.f32 %v348, 0.0
    %v401 = vmax.f32 %v353, 0.0
    %v402 = vmax.f32 %v356, 0.0
    %v403 = vmax.f32 %v361, 0.0
    %v404 = vmax.f32 %v364, 0.0
    %v405 = vmax.f32 %v369, 0.0
    %v406 = vmax.f32 %v372, 0.0
    %v407 = vmax.f32 %v375, %v379
    %v408 = vmax.f32 %v376, %v380
    %v409 = vmax.f32 %v377, %v381
    %v410 = vmax.f32 %v378, %v382
    %v411 = vmax.f32 %v407, %v383
    %v412 = vmax.f32 %v408, %v384
    %v413 = vmax.f32 %v409, %v385
    %v414 = vmax.f32 %v410, %v386
    %v415 = vmax.f32 %v411, %v387
    %v416 = vmax.f32 %v412, %v388
    %v417 = vmax.f32 %v413, %v389
    %v418 = vmax.f32 %v414, %v390
    %v419 = vmax.f32 %v415, %v391
    %v420 = vmax.f32 %v416, %v392
    %v421 = vmax.f32 %v417, %v393
    %v422 = vmax.f32 %v418, %v394
    %v423 = vmax.f32 %v419, %v395
    %v424 = vmax.f32 %v420, %v396
    %v425 = vmax.f32 %v421, %v397
    %v426 = vmax.f32 %v422, %v398
    %v427 = vmax.f32 %v423, %v399
    %v428 = vmax.f32 %v424, %v400
    %v429 = vmax.f32 %v425, %v401
    %v430 = vmax.f32 %v426, %v402
    %v431 = vmax.f32 %v427, %v403
    %v432 = vmax.f32 %v428, %v404
    %v433 = vmax.f32 %v429, %v405
    %v434 = vmax.f32 %v430, %v406
    %v435 = vmax.f32 %v431, %v432
    %v436 = vmax.f32 %v433, %v434
    %v437 = vmax.f32 %v435, %v436
    %v438 = vrot.slane %v437, 4
    %v439 = vmax.f32 %v437, %v438
    %v440 = vrot.slane %v439, 2
    %v441 = vmax.f32 %v439, %v440
    %v442 = vrot.slane %v441, 1
    %v443 = vmax.f32 %v441, %v442
    %v444 = vld [vmem:[%s3] sm:$0xff]
    %v445 = vld [vmem:[%s3 + $0x8] sm:$0xff]
    %v446 = vadd.f32 %v444, %v443
    %v447 = vadd.f32 %v445, %v443
    %v448 = vpack.c.bf16 %v447, %v446
    %v449 = vld [vmem:[%s4] sm:$0xf]
    %v450 = vld [vmem:[%s4 + $0x4] sm:$0xf]
    %v451 = vld [vmem:[%s4 + $0x8] sm:$0xf]
    %v452 = vld [vmem:[%s4 + $0xc] sm:$0xf]
    %v453 = vld [vmem:[%s4 + $0x10] sm:$0xf]
    %v454 = vld [vmem:[%s4 + $0x14] sm:$0xf]
    %v455 = vld [vmem:[%s4 + $0x18] sm:$0xf]
    %v456 = vld [vmem:[%s4 + $0x1c] sm:$0xf]
    %v457 = vld [vmem:[%s4 + $0x20] sm:$0xf]
    %v458 = vld [vmem:[%s4 + $0x24] sm:$0xf]
    %v459 = vld [vmem:[%s4 + $0x28] sm:$0xf]
    %v460 = vld [vmem:[%s4 + $0x2c] sm:$0xf]
    %v461 = vld [vmem:[%s4 + $0x30] sm:$0xf]
    %v462 = vld [vmem:[%s4 + $0x34] sm:$0xf]
    %v463 = vld [vmem:[%s4 + $0x38] sm:$0xf]
    %v464 = vld [vmem:[%s4 + $0x3c] sm:$0xf]
    %v465 = vld [vmem:[%s4 + $0x40] sm:$0xf]
    %v466 = vld [vmem:[%s4 + $0x44] sm:$0xf]
    %v467 = vld [vmem:[%s4 + $0x48] sm:$0xf]
    %v468 = vld [vmem:[%s4 + $0x4c] sm:$0xf]
    %v469 = vld [vmem:[%s4 + $0x50] sm:$0xf]
    %v470 = vld [vmem:[%s4 + $0x54] sm:$0xf]
    %v471 = vld [vmem:[%s4 + $0x58] sm:$0xf]
    %v472 = vld [vmem:[%s4 + $0x5c] sm:$0xf]
    %v473 = vld [vmem:[%s4 + $0x60] sm:$0xf]
    %v474 = vld [vmem:[%s4 + $0x64] sm:$0xf]
    %v475 = vld [vmem:[%s4 + $0x68] sm:$0xf]
    %v476 = vld [vmem:[%s4 + $0x6c] sm:$0xf]
    %v477 = vld [vmem:[%s4 + $0x70] sm:$0xf]
    %v478 = vld [vmem:[%s4 + $0x74] sm:$0xf]
    %v479 = vld [vmem:[%s4 + $0x78] sm:$0xf]
    %v480 = vld [vmem:[%s4 + $0x7c] sm:$0xf]
    %v481 = vld [vmem:[%s4 + $0x80] sm:$0xf]
    %v482 = vld [vmem:[%s4 + $0x84] sm:$0xf]
    %v483 = vld [vmem:[%s4 + $0x88] sm:$0xf]
    %v484 = vld [vmem:[%s4 + $0x8c] sm:$0xf]
    %v485 = vld [vmem:[%s4 + $0x90] sm:$0xf]
    %v486 = vld [vmem:[%s4 + $0x94] sm:$0xf]
    %v487 = vld [vmem:[%s4 + $0x98] sm:$0xf]
    %v488 = vld [vmem:[%s4 + $0x9c] sm:$0xf]
    %v489 = vld [vmem:[%s4 + $0xa0] sm:$0xf]
    %v490 = vld [vmem:[%s4 + $0xa4] sm:$0xf]
    %v491 = vld [vmem:[%s4 + $0xa8] sm:$0xf]
    %v492 = vld [vmem:[%s4 + $0xac] sm:$0xf]
    %v493 = vld [vmem:[%s4 + $0xb0] sm:$0xf]
    %v494 = vld [vmem:[%s4 + $0xb4] sm:$0xf]
    %v495 = vld [vmem:[%s4 + $0xb8] sm:$0xf]
    %v496 = vld [vmem:[%s4 + $0xbc] sm:$0xf]
    %v497 = vld [vmem:[%s4 + $0xc0] sm:$0xf]
    %v498 = vld [vmem:[%s4 + $0xc4] sm:$0xf]
    %v499 = vld [vmem:[%s4 + $0xc8] sm:$0xf]
    %v500 = vld [vmem:[%s4 + $0xcc] sm:$0xf]
    %v501 = vld [vmem:[%s4 + $0xd0] sm:$0xf]
    %v502 = vld [vmem:[%s4 + $0xd4] sm:$0xf]
    %v503 = vld [vmem:[%s4 + $0xd8] sm:$0xf]
    %v504 = vld [vmem:[%s4 + $0xdc] sm:$0xf]
    %v505 = vld [vmem:[%s4 + $0xe0] sm:$0xf]
    %v506 = vld [vmem:[%s4 + $0xe4] sm:$0xf]
    %v507 = vld [vmem:[%s4 + $0xe8] sm:$0xf]
    %v508 = vld [vmem:[%s4 + $0xec] sm:$0xf]
    %v509 = vld [vmem:[%s4 + $0xf0] sm:$0xf]
    %v510 = vld [vmem:[%s4 + $0xf4] sm:$0xf]
    %v511 = vld [vmem:[%s4 + $0xf8] sm:$0xf]
    %v512 = vld [vmem:[%s4 + $0xfc] sm:$0xf]
    %v513 = vld [vmem:[%s4 + $0x100] sm:$0xf]
    %v514 = vld [vmem:[%s4 + $0x104] sm:$0xf]
    %v515 = vld [vmem:[%s4 + $0x108] sm:$0xf]
    %v516 = vld [vmem:[%s4 + $0x10c] sm:$0xf]
    %v517 = vld [vmem:[%s4 + $0x110] sm:$0xf]
    %v518 = vld [vmem:[%s4 + $0x114] sm:$0xf]
    %v519 = vld [vmem:[%s4 + $0x118] sm:$0xf]
    %v520 = vld [vmem:[%s4 + $0x11c] sm:$0xf]
    %v593 = vunpack.c.l.b16 %v449
    %v594 = vunpack.c.l.b16 %v450
    %v595 = vunpack.c.l.b16 %v451
    %v596 = vunpack.c.l.b16 %v452
    %v597 = vunpack.c.l.b16 %v453
    %v598 = vunpack.c.l.b16 %v454
    %v599 = vunpack.c.l.b16 %v455
    %v600 = vunpack.c.l.b16 %v456
    %v601 = vunpack.c.l.b16 %v457
    %v602 = vunpack.c.l.b16 %v458
    %v603 = vunpack.c.l.b16 %v459
    %v604 = vunpack.c.l.b16 %v460
    %v605 = vunpack.c.l.b16 %v461
    %v606 = vunpack.c.l.b16 %v462
    %v607 = vunpack.c.l.b16 %v463
    %v608 = vunpack.c.l.b16 %v464
    %v609 = vunpack.c.l.b16 %v465
    %v610 = vunpack.c.l.b16 %v466
    %v611 = vunpack.c.l.b16 %v467
    %v612 = vunpack.c.l.b16 %v468
    %v613 = vunpack.c.l.b16 %v469
    %v614 = vunpack.c.l.b16 %v470
    %v615 = vunpack.c.l.b16 %v471
    %v616 = vunpack.c.l.b16 %v472
    %v617 = vunpack.c.l.b16 %v473
    %v618 = vunpack.c.l.b16 %v474
    %v619 = vunpack.c.l.b16 %v475
    %v620 = vunpack.c.l.b16 %v476
    %v621 = vunpack.c.l.b16 %v477
    %v622 = vunpack.c.l.b16 %v478
    %v623 = vunpack.c.l.b16 %v479
    %v624 = vunpack.c.l.b16 %v480
    %v625 = vunpack.c.l.b16 %v481
    %v626 = vunpack.c.l.b16 %v482
    %v627 = vunpack.c.l.b16 %v483
    %v628 = vunpack.c.l.b16 %v484
    %v629 = vunpack.c.l.b16 %v485
    %v630 = vunpack.c.l.b16 %v486
    %v631 = vunpack.c.l.b16 %v487
    %v632 = vunpack.c.l.b16 %v488
    %v633 = vunpack.c.l.b16 %v489
    %v634 = vunpack.c.l.b16 %v490
    %v635 = vunpack.c.l.b16 %v491
    %v636 = vunpack.c.l.b16 %v492
    %v637 = vunpack.c.l.b16 %v493
    %v638 = vunpack.c.l.b16 %v494
    %v639 = vunpack.c.l.b16 %v495
    %v640 = vunpack.c.l.b16 %v496
    %v641 = vunpack.c.l.b16 %v497
    %v642 = vunpack.c.l.b16 %v498
    %v643 = vunpack.c.l.b16 %v499
    %v644 = vunpack.c.l.b16 %v500
    %v645 = vunpack.c.l.b16 %v501
    %v646 = vunpack.c.l.b16 %v502
    %v647 = vunpack.c.l.b16 %v503
    %v648 = vunpack.c.l.b16 %v504
    %v649 = vunpack.c.l.b16 %v505
    %v650 = vunpack.c.l.b16 %v506
    %v651 = vunpack.c.l.b16 %v507
    %v652 = vunpack.c.l.b16 %v508
    %v653 = vunpack.c.l.b16 %v509
    %v654 = vunpack.c.l.b16 %v510
    %v655 = vunpack.c.l.b16 %v511
    %v656 = vunpack.c.l.b16 %v512
    %v657 = vunpack.c.l.b16 %v513
    %v658 = vunpack.c.l.b16 %v514
    %v659 = vunpack.c.l.b16 %v515
    %v660 = vunpack.c.l.b16 %v516
    %v661 = vunpack.c.l.b16 %v517
    %v662 = vunpack.c.l.b16 %v518
    %v663 = vunpack.c.l.b16 %v519
    %v664 = vunpack.c.l.b16 %v520
    %v665 = vpack.c.b16 %v594, %v593
    %v666 = vpack.c.b16 %v596, %v595
    %v667 = vpack.c.b16 %v598, %v597
    %v668 = vpack.c.b16 %v600, %v599
    %v669 = vpack.c.b16 %v602, %v601
    %v670 = vpack.c.b16 %v604, %v603
    %v671 = vpack.c.b16 %v606, %v605
    %v672 = vpack.c.b16 %v608, %v607
    %v673 = vpack.c.b16 %v610, %v609
    %v674 = vpack.c.b16 %v612, %v611
    %v675 = vpack.c.b16 %v614, %v613
    %v676 = vpack.c.b16 %v616, %v615
    %v677 = vpack.c.b16 %v618, %v617
    %v678 = vpack.c.b16 %v620, %v619
    %v679 = vpack.c.b16 %v622, %v621
    %v680 = vpack.c.b16 %v624, %v623
    %v681 = vpack.c.b16 %v626, %v625
    %v682 = vpack.c.b16 %v628, %v627
    %v683 = vpack.c.b16 %v630, %v629
    %v684 = vpack.c.b16 %v632, %v631
    %v685 = vpack.c.b16 %v634, %v633
    %v686 = vpack.c.b16 %v636, %v635
    %v687 = vpack.c.b16 %v638, %v637
    %v688 = vpack.c.b16 %v640, %v639
    %v689 = vpack.c.b16 %v642, %v641
    %v690 = vpack.c.b16 %v644, %v643
    %v691 = vpack.c.b16 %v646, %v645
    %v692 = vpack.c.b16 %v648, %v647
    %v693 = vpack.c.b16 %v650, %v649
    %v694 = vpack.c.b16 %v652, %v651
    %v695 = vpack.c.b16 %v654, %v653
    %v696 = vpack.c.b16 %v656, %v655
    %v697 = vpack.c.b16 %v658, %v657
    %v698 = vpack.c.b16 %v660, %v659
    %v699 = vpack.c.b16 %v662, %v661
    %v700 = vpack.c.b16 %v664, %v663
    %vm701 = vcmask 130048
    %v703 = vsel %vm701, %v665, 0
    %v706 = vsel %vm701, %v666, 0
    %v709 = vsel %vm701, %v667, 0
    %v712 = vsel %vm701, %v668, 0
    %v715 = vsel %vm701, %v669, 0
    %v718 = vsel %vm701, %v670, 0
    %v721 = vsel %vm701, %v671, 0
    %v724 = vsel %vm701, %v672, 0
    %v727 = vsel %vm701, %v673, 0
    %v730 = vsel %vm701, %v674, 0
    %v733 = vsel %vm701, %v675, 0
    %v736 = vsel %vm701, %v676, 0
    %v739 = vsel %vm701, %v677, 0
    %v742 = vsel %vm701, %v678, 0
    %v745 = vsel %vm701, %v679, 0
    %v748 = vsel %vm701, %v680, 0
    %v751 = vsel %vm701, %v681, 0
    %v754 = vsel %vm701, %v682, 0
    %v757 = vsel %vm701, %v683, 0
    %v760 = vsel %vm701, %v684, 0
    %v763 = vsel %vm701, %v685, 0
    %v766 = vsel %vm701, %v686, 0
    %v769 = vsel %vm701, %v687, 0
    %v772 = vsel %vm701, %v688, 0
    %v775 = vsel %vm701, %v689, 0
    %v778 = vsel %vm701, %v690, 0
    %v781 = vsel %vm701, %v691, 0
    %v784 = vsel %vm701, %v692, 0
    %v787 = vsel %vm701, %v693, 0
    %v790 = vsel %vm701, %v694, 0
    %v793 = vsel %vm701, %v695, 0
    %v796 = vsel %vm701, %v696, 0
    %v799 = vsel %vm701, %v697, 0
    %v802 = vsel %vm701, %v698, 0
    %v805 = vsel %vm701, %v699, 0
    %v808 = vsel %vm701, %v700, 0
    %810 = vmatprep.subr.bf16.mxu0 0
    %811 = vmatpush1.bf16.msra.mxu0 %v448
    %812 = vmatprep.subr.bf16.mxu0 0
    %813 = vmatpush1.bf16.msra.mxu0 0
    %814 = vmatprep.subr.bf16.mxu0 0
    %815 = vmatpush1.bf16.msra.mxu0 0
    %816 = vmatprep.subr.bf16.mxu0 0
    %817 = vmatpush1.bf16.msra.mxu0 0
    %818 = vmatprep.subr.bf16.mxu0 0
    %819 = vmatpush1.bf16.msra.mxu0 0
    %820 = vmatprep.subr.bf16.mxu0 0
    %821 = vmatpush1.bf16.msra.mxu0 0
    %822 = vmatprep.subr.bf16.mxu0 0
    %823 = vmatpush1.bf16.msra.mxu0 0
    %824 = vmatprep.subr.bf16.mxu0 0
    %825 = vmatpush1.bf16.msra.mxu0 0
    %826 = vmatprep.subr.bf16.mxu0 0
    %827 = vmatpush1.bf16.msra.mxu0 0
    %828 = vmatprep.subr.bf16.mxu0 0
    %829 = vmatpush1.bf16.msra.mxu0 0
    %830 = vmatprep.subr.bf16.mxu0 0
    %831 = vmatpush1.bf16.msra.mxu0 0
    %832 = vmatprep.subr.bf16.mxu0 0
    %833 = vmatpush1.bf16.msra.mxu0 0
    %834 = vmatprep.subr.bf16.mxu0 0
    %835 = vmatpush1.bf16.msra.mxu0 0
    %836 = vmatprep.subr.bf16.mxu0 0
    %837 = vmatpush1.bf16.msra.mxu0 0
    %838 = vmatprep.subr.bf16.mxu0 0
    %839 = vmatpush1.bf16.msra.mxu0 0
    %840 = vmatprep.subr.bf16.mxu0 0
    %841 = vmatpush1.bf16.msra.mxu0 0
    %842 = vmatprep.mubr.bf16.mxu0 0
    %843 = vmatmul.mubr.bf16.gmra.mrb[0].mxu0 %v703
    %v844 = vpop.f32.mrb[0].mxu0
    %v845 = vadd.f32 0.0, %v844
    %v846 = vpop.f32.mrb[0].mxu0
    %v847 = vpop.f32.mrb[0].mxu0
    %v848 = vadd.f32 0.0, %v847
    %v849 = vpop.f32.mrb[0].mxu0
    %850 = vmatprep.mubr.bf16.mxu0 0
    %851 = vmatmul.mubr.bf16.gmra.mrb[0].mxu0 %v706
    %v852 = vpop.f32.mrb[0].mxu0
    %v853 = vadd.f32 0.0, %v852
    %v854 = vpop.f32.mrb[0].mxu0
    %v855 = vpop.f32.mrb[0].mxu0
    %v856 = vadd.f32 0.0, %v855
    %v857 = vpop.f32.mrb[0].mxu0
    %858 = vmatprep.mubr.bf16.mxu0 0
    %859 = vmatmul.mubr.bf16.gmra.mrb[0].mxu0 %v709
    %v860 = vpop.f32.mrb[0].mxu0
    %v861 = vadd.f32 0.0, %v860
    %v862 = vpop.f32.mrb[0].mxu0
    %v863 = vpop.f32.mrb[0].mxu0
    %v864 = vadd.f32 0.0, %v863
    %v865 = vpop.f32.mrb[0].mxu0
    %866 = vmatprep.mubr.bf16.mxu0 0
    %867 = vmatmul.mubr.bf16.gmra.mrb[0].mxu0 %v712
    %v868 = vpop.f32.mrb[0].mxu0
    %v869 = vadd.f32 0.0, %v868
    %v870 = vpop.f32.mrb[0].mxu0
    %v871 = vpop.f32.mrb[0].mxu0
    %v872 = vadd.f32 0.0, %v871
    %v873 = vpop.f32.mrb[0].mxu0
    %874 = vmatprep.mubr.bf16.mxu0 0
    %875 = vmatmul.mubr.bf16.gmra.mrb[0].mxu0 %v715
    %v876 = vpop.f32.mrb[0].mxu0
    %v877 = vadd.f32 0.0, %v876
    %v878 = vpop.f32.mrb[0].mxu0
    %v879 = vpop.f32.mrb[0].mxu0
    %v880 = vadd.f32 0.0, %v879
    %v881 = vpop.f32.mrb[0].mxu0
    %882 = vmatprep.mubr.bf16.mxu0 0
    %883 = vmatmul.mubr.bf16.gmra.mrb[0].mxu0 %v718
    %v884 = vpop.f32.mrb[0].mxu0
    %v885 = vadd.f32 0.0, %v884
    %v886 = vpop.f32.mrb[0].mxu0
    %v887 = vpop.f32.mrb[0].mxu0
    %v888 = vadd.f32 0.0, %v887
    %v889 = vpop.f32.mrb[0].mxu0
    %890 = vmatprep.mubr.bf16.mxu0 0
    %891 = vmatmul.mubr.bf16.gmra.mrb[0].mxu0 %v721
    %v892 = vpop.f32.mrb[0].mxu0
    %v893 = vadd.f32 0.0, %v892
    %v894 = vpop.f32.mrb[0].mxu0
    %v895 = vpop.f32.mrb[0].mxu0
    %v896 = vadd.f32 0.0, %v895
    %v897 = vpop.f32.mrb[0].mxu0
    %898 = vmatprep.mubr.bf16.mxu0 0
    %899 = vmatmul.mubr.bf16.gmra.mrb[0].mxu0 %v724
    %v900 = vpop.f32.mrb[0].mxu0
    %v901 = vadd.f32 0.0, %v900
    %v902 = vpop.f32.mrb[0].mxu0
    %v903 = vpop.f32.mrb[0].mxu0
    %v904 = vadd.f32 0.0, %v903
    %v905 = vpop.f32.mrb[0].mxu0
    %906 = vmatprep.mubr.bf16.mxu0 0
    %907 = vmatmul.mubr.bf16.gmra.mrb[0].mxu0 %v727
    %v908 = vpop.f32.mrb[0].mxu0
    %v909 = vadd.f32 0.0, %v908
    %v910 = vpop.f32.mrb[0].mxu0
    %v911 = vpop.f32.mrb[0].mxu0
    %v912 = vadd.f32 0.0, %v911
    %v913 = vpop.f32.mrb[0].mxu0
    %914 = vmatprep.mubr.bf16.mxu0 0
    %915 = vmatmul.mubr.bf16.gmra.mrb[0].mxu0 %v730
    %v916 = vpop.f32.mrb[0].mxu0
    %v917 = vadd.f32 0.0, %v916
    %v918 = vpop.f32.mrb[0].mxu0
    %v919 = vpop.f32.mrb[0].mxu0
    %v920 = vadd.f32 0.0, %v919
    %v921 = vpop.f32.mrb[0].mxu0
    %922 = vmatprep.mubr.bf16.mxu0 0
    %923 = vmatmul.mubr.bf16.gmra.mrb[0].mxu0 %v733
    %v924 = vpop.f32.mrb[0].mxu0
    %v925 = vadd.f32 0.0, %v924
    %v926 = vpop.f32.mrb[0].mxu0
    %v927 = vpop.f32.mrb[0].mxu0
    %v928 = vadd.f32 0.0, %v927
    %v929 = vpop.f32.mrb[0].mxu0
    %930 = vmatprep.mubr.bf16.mxu0 0
    %931 = vmatmul.mubr.bf16.gmra.mrb[0].mxu0 %v736
    %v932 = vpop.f32.mrb[0].mxu0
    %v933 = vadd.f32 0.0, %v932
    %v934 = vpop.f32.mrb[0].mxu0
    %v935 = vpop.f32.mrb[0].mxu0
    %v936 = vadd.f32 0.0, %v935
    %v937 = vpop.f32.mrb[0].mxu0
    %938 = vmatprep.mubr.bf16.mxu0 0
    %939 = vmatmul.mubr.bf16.gmra.mrb[0].mxu0 %v739
    %v940 = vpop.f32.mrb[0].mxu0
    %v941 = vadd.f32 0.0, %v940
    %v942 = vpop.f32.mrb[0].mxu0
    %v943 = vpop.f32.mrb[0].mxu0
    %v944 = vadd.f32 0.0, %v943
    %v945 = vpop.f32.mrb[0].mxu0
    %946 = vmatprep.mubr.bf16.mxu0 0
    %947 = vmatmul.mubr.bf16.gmra.mrb[0].mxu0 %v742
    %v948 = vpop.f32.mrb[0].mxu0
    %v949 = vadd.f32 0.0, %v948
    %v950 = vpop.f32.mrb[0].mxu0
    %v951 = vpop.f32.mrb[0].mxu0
    %v952 = vadd.f32 0.0, %v951
    %v953 = vpop.f32.mrb[0].mxu0
    %954 = vmatprep.mubr.bf16.mxu0 0
    %955 = vmatmul.mubr.bf16.gmra.mrb[0].mxu0 %v745
    %v956 = vpop.f32.mrb[0].mxu0
    %v957 = vadd.f32 0.0, %v956
    %v958 = vpop.f32.mrb[0].mxu0
    %v959 = vpop.f32.mrb[0].mxu0
    %v960 = vadd.f32 0.0, %v959
    %v961 = vpop.f32.mrb[0].mxu0
    %962 = vmatprep.mubr.bf16.mxu0 0
    %963 = vmatmul.mubr.bf16.gmra.mrb[0].mxu0 %v748
    %v964 = vpop.f32.mrb[0].mxu0
    %v965 = vadd.f32 0.0, %v964
    %v966 = vpop.f32.mrb[0].mxu0
    %v967 = vpop.f32.mrb[0].mxu0
    %v968 = vadd.f32 0.0, %v967
    %v969 = vpop.f32.mrb[0].mxu0
    %970 = vmatprep.mubr.bf16.mxu0 0
    %971 = vmatmul.mubr.bf16.gmra.mrb[0].mxu0 %v751
    %v972 = vpop.f32.mrb[0].mxu0
    %v973 = vadd.f32 0.0, %v972
    %v974 = vpop.f32.mrb[0].mxu0
    %v975 = vpop.f32.mrb[0].mxu0
    %v976 = vadd.f32 0.0, %v975
    %v977 = vpop.f32.mrb[0].mxu0
    %978 = vmatprep.mubr.bf16.mxu0 0
    %979 = vmatmul.mubr.bf16.gmra.mrb[0].mxu0 %v754
    %v980 = vpop.f32.mrb[0].mxu0
    %v981 = vadd.f32 0.0, %v980
    %v982 = vpop.f32.mrb[0].mxu0
    %v983 = vpop.f32.mrb[0].mxu0
    %v984 = vadd.f32 0.0, %v983
    %v985 = vpop.f32.mrb[0].mxu0
    %986 = vmatprep.mubr.bf16.mxu0 0
    %987 = vmatmul.mubr.bf16.gmra.mrb[0].mxu0 %v757
    %v988 = vpop.f32.mrb[0].mxu0
    %v989 = vadd.f32 0.0, %v988
    %v990 = vpop.f32.mrb[0].mxu0
    %v991 = vpop.f32.mrb[0].mxu0
    %v992 = vadd.f32 0.0, %v991
    %v993 = vpop.f32.mrb[0].mxu0
    %994 = vmatprep.mubr.bf16.mxu0 0
    %995 = vmatmul.mubr.bf16.gmra.mrb[0].mxu0 %v760
    %v996 = vpop.f32.mrb[0].mxu0
    %v997 = vadd.f32 0.0, %v996
    %v998 = vpop.f32.mrb[0].mxu0
    %v999 = vpop.f32.mrb[0].mxu0
    %v1000 = vadd.f32 0.0, %v999
    %v1001 = vpop.f32.mrb[0].mxu0
    %1002 = vmatprep.mubr.bf16.mxu0 0
    %1003 = vmatmul.mubr.bf16.gmra.mrb[0].mxu0 %v763
    %v1004 = vpop.f32.mrb[0].mxu0
    %v1005 = vadd.f32 0.0, %v1004
    %v1006 = vpop.f32.mrb[0].mxu0
    %v1007 = vpop.f32.mrb[0].mxu0
    %v1008 = vadd.f32 0.0, %v1007
    %v1009 = vpop.f32.mrb[0].mxu0
    %1010 = vmatprep.mubr.bf16.mxu0 0
    %1011 = vmatmul.mubr.bf16.gmra.mrb[0].mxu0 %v766
    %v1012 = vpop.f32.mrb[0].mxu0
    %v1013 = vadd.f32 0.0, %v1012
    %v1014 = vpop.f32.mrb[0].mxu0
    %v1015 = vpop.f32.mrb[0].mxu0
    %v1016 = vadd.f32 0.0, %v1015
    %v1017 = vpop.f32.mrb[0].mxu0
    %1018 = vmatprep.mubr.bf16.mxu0 0
    %1019 = vmatmul.mubr.bf16.gmra.mrb[0].mxu0 %v769
    %v1020 = vpop.f32.mrb[0].mxu0
    %v1021 = vadd.f32 0.0, %v1020
    %v1022 = vpop.f32.mrb[0].mxu0
    %v1023 = vpop.f32.mrb[0].mxu0
    %v1024 = vadd.f32 0.0, %v1023
    %v1025 = vpop.f32.mrb[0].mxu0
    %1026 = vmatprep.mubr.bf16.mxu0 0
    %1027 = vmatmul.mubr.bf16.gmra.mrb[0].mxu0 %v772
    %v1028 = vpop.f32.mrb[0].mxu0
    %v1029 = vadd.f32 0.0, %v1028
    %v1030 = vpop.f32.mrb[0].mxu0
    %v1031 = vpop.f32.mrb[0].mxu0
    %v1032 = vadd.f32 0.0, %v1031
    %v1033 = vpop.f32.mrb[0].mxu0
    %1034 = vmatprep.mubr.bf16.mxu0 0
    %1035 = vmatmul.mubr.bf16.gmra.mrb[0].mxu0 %v775
    %v1036 = vpop.f32.mrb[0].mxu0
    %v1037 = vadd.f32 0.0, %v1036
    %v1038 = vpop.f32.mrb[0].mxu0
    %v1039 = vpop.f32.mrb[0].mxu0
    %v1040 = vadd.f32 0.0, %v1039
    %v1041 = vpop.f32.mrb[0].mxu0
    %1042 = vmatprep.mubr.bf16.mxu0 0
    %1043 = vmatmul.mubr.bf16.gmra.mrb[0].mxu0 %v778
    %v1044 = vpop.f32.mrb[0].mxu0
    %v1045 = vadd.f32 0.0, %v1044
    %v1046 = vpop.f32.mrb[0].mxu0
    %v1047 = vpop.f32.mrb[0].mxu0
    %v1048 = vadd.f32 0.0, %v1047
    %v1049 = vpop.f32.mrb[0].mxu0
    %1050 = vmatprep.mubr.bf16.mxu0 0
    %1051 = vmatmul.mubr.bf16.gmra.mrb[0].mxu0 %v781
    %v1052 = vpop.f32.mrb[0].mxu0
    %v1053 = vadd.f32 0.0, %v1052
    %v1054 = vpop.f32.mrb[0].mxu0
    %v1055 = vpop.f32.mrb[0].mxu0
    %v1056 = vadd.f32 0.0, %v1055
    %v1057 = vpop.f32.mrb[0].mxu0
    %1058 = vmatprep.mubr.bf16.mxu0 0
    %1059 = vmatmul.mubr.bf16.gmra.mrb[0].mxu0 %v784
    %v1060 = vpop.f32.mrb[0].mxu0
    %v1061 = vadd.f32 0.0, %v1060
    %v1062 = vpop.f32.mrb[0].mxu0
    %v1063 = vpop.f32.mrb[0].mxu0
    %v1064 = vadd.f32 0.0, %v1063
    %v1065 = vpop.f32.mrb[0].mxu0
    %1066 = vmatprep.mubr.bf16.mxu0 0
    %1067 = vmatmul.mubr.bf16.gmra.mrb[0].mxu0 %v787
    %v1068 = vpop.f32.mrb[0].mxu0
    %v1069 = vadd.f32 0.0, %v1068
    %v1070 = vpop.f32.mrb[0].mxu0
    %v1071 = vpop.f32.mrb[0].mxu0
    %v1072 = vadd.f32 0.0, %v1071
    %v1073 = vpop.f32.mrb[0].mxu0
    %1074 = vmatprep.mubr.bf16.mxu0 0
    %1075 = vmatmul.mubr.bf16.gmra.mrb[0].mxu0 %v790
    %v1076 = vpop.f32.mrb[0].mxu0
    %v1077 = vadd.f32 0.0, %v1076
    %v1078 = vpop.f32.mrb[0].mxu0
    %v1079 = vpop.f32.mrb[0].mxu0
    %v1080 = vadd.f32 0.0, %v1079
    %v1081 = vpop.f32.mrb[0].mxu0
    %1082 = vmatprep.mubr.bf16.mxu0 0
    %1083 = vmatmul.mubr.bf16.gmra.mrb[0].mxu0 %v793
    %v1084 = vpop.f32.mrb[0].mxu0
    %v1085 = vadd.f32 0.0, %v1084
    %v1086 = vpop.f32.mrb[0].mxu0
    %v1087 = vpop.f32.mrb[0].mxu0
    %v1088 = vadd.f32 0.0, %v1087
    %v1089 = vpop.f32.mrb[0].mxu0
    %1090 = vmatprep.mubr.bf16.mxu0 0
    %1091 = vmatmul.mubr.bf16.gmra.mrb[0].mxu0 %v796
    %v1092 = vpop.f32.mrb[0].mxu0
    %v1093 = vadd.f32 0.0, %v1092
    %v1094 = vpop.f32.mrb[0].mxu0
    %v1095 = vpop.f32.mrb[0].mxu0
    %v1096 = vadd.f32 0.0, %v1095
    %v1097 = vpop.f32.mrb[0].mxu0
    %1098 = vmatprep.mubr.bf16.mxu0 0
    %1099 = vmatmul.mubr.bf16.gmra.mrb[0].mxu0 %v799
    %v1100 = vpop.f32.mrb[0].mxu0
    %v1101 = vadd.f32 0.0, %v1100
    %v1102 = vpop.f32.mrb[0].mxu0
    %v1103 = vpop.f32.mrb[0].mxu0
    %v1104 = vadd.f32 0.0, %v1103
    %v1105 = vpop.f32.mrb[0].mxu0
    %1106 = vmatprep.mubr.bf16.mxu0 0
    %1107 = vmatmul.mubr.bf16.gmra.mrb[0].mxu0 %v802
    %v1108 = vpop.f32.mrb[0].mxu0
    %v1109 = vadd.f32 0.0, %v1108
    %v1110 = vpop.f32.mrb[0].mxu0
    %v1111 = vpop.f32.mrb[0].mxu0
    %v1112 = vadd.f32 0.0, %v1111
    %v1113 = vpop.f32.mrb[0].mxu0
    %1114 = vmatprep.mubr.bf16.mxu0 0
    %1115 = vmatmul.mubr.bf16.gmra.mrb[0].mxu0 %v805
    %v1116 = vpop.f32.mrb[0].mxu0
    %v1117 = vadd.f32 0.0, %v1116
    %v1118 = vpop.f32.mrb[0].mxu0
    %v1119 = vpop.f32.mrb[0].mxu0
    %v1120 = vadd.f32 0.0, %v1119
    %v1121 = vpop.f32.mrb[0].mxu0
    %1122 = vmatprep.mubr.bf16.mxu0 0
    %1123 = vmatmul.mubr.bf16.gmra.mrb[0].mxu0 %v808
    %v1124 = vpop.f32.mrb[0].mxu0
    %v1125 = vadd.f32 0.0, %v1124
    %v1126 = vpop.f32.mrb[0].mxu0
    %v1127 = vpop.f32.mrb[0].mxu0
    %v1128 = vadd.f32 0.0, %v1127
    %v1129 = vpop.f32.mrb[0].mxu0
    %1130 = vdwg.mxu0
    %v1131 = vpack.c.bf16 %v848, %v845
    %v1132 = vpack.c.bf16 %v856, %v853
    %v1133 = vpack.c.bf16 %v864, %v861
    %v1134 = vpack.c.bf16 %v872, %v869
    %v1135 = vpack.c.bf16 %v880, %v877
    %v1136 = vpack.c.bf16 %v888, %v885
    %v1137 = vpack.c.bf16 %v896, %v893
    %v1138 = vpack.c.bf16 %v904, %v901
    %v1139 = vpack.c.bf16 %v912, %v909
    %v1140 = vpack.c.bf16 %v920, %v917
    %v1141 = vpack.c.bf16 %v928, %v925
    %v1142 = vpack.c.bf16 %v936, %v933
    %v1143 = vpack.c.bf16 %v944, %v941
    %v1144 = vpack.c.bf16 %v952, %v949
    %v1145 = vpack.c.bf16 %v960, %v957
    %v1146 = vpack.c.bf16 %v968, %v965
    %v1147 = vpack.c.bf16 %v976, %v973
    %v1148 = vpack.c.bf16 %v984, %v981
    %v1149 = vpack.c.bf16 %v992, %v989
    %v1150 = vpack.c.bf16 %v1000, %v997
    %v1151 = vpack.c.bf16 %v1008, %v1005
    %v1152 = vpack.c.bf16 %v1016, %v1013
    %v1153 = vpack.c.bf16 %v1024, %v1021
    %v1154 = vpack.c.bf16 %v1032, %v1029
    %v1155 = vpack.c.bf16 %v1040, %v1037
    %v1156 = vpack.c.bf16 %v1048, %v1045
    %v1157 = vpack.c.bf16 %v1056, %v1053
    %v1158 = vpack.c.bf16 %v1064, %v1061
    %v1159 = vpack.c.bf16 %v1072, %v1069
    %v1160 = vpack.c.bf16 %v1080, %v1077
    %v1161 = vpack.c.bf16 %v1088, %v1085
    %v1162 = vpack.c.bf16 %v1096, %v1093
    %v1163 = vpack.c.bf16 %v1104, %v1101
    %v1164 = vpack.c.bf16 %v1112, %v1109
    %v1165 = vpack.c.bf16 %v1120, %v1117
    %v1166 = vpack.c.bf16 %v1128, %v1125
    %1167 = vst [vmem:[#allocation2] sm:$0xff] %v1131
    %1168 = vst [vmem:[#allocation2 + $0x8] sm:$0xff] %v1132
    %1169 = vst [vmem:[#allocation2 + $0x10] sm:$0xff] %v1133
    %1170 = vst [vmem:[#allocation2 + $0x18] sm:$0xff] %v1134
    %1171 = vst [vmem:[#allocation2 + $0x20] sm:$0xff] %v1135
    %1172 = vst [vmem:[#allocation2 + $0x28] sm:$0xff] %v1136
    %1173 = vst [vmem:[#allocation2 + $0x30] sm:$0xff] %v1137
    %1174 = vst [vmem:[#allocation2 + $0x38] sm:$0xff] %v1138
    %1175 = vst [vmem:[#allocation2 + $0x40] sm:$0xff] %v1139
    %1176 = vst [vmem:[#allocation2 + $0x48] sm:$0xff] %v1140
    %1177 = vst [vmem:[#allocation2 + $0x50] sm:$0xff] %v1141
    %1178 = vst [vmem:[#allocation2 + $0x58] sm:$0xff] %v1142
    %1179 = vst [vmem:[#allocation2 + $0x60] sm:$0xff] %v1143
    %1180 = vst [vmem:[#allocation2 + $0x68] sm:$0xff] %v1144
    %1181 = vst [vmem:[#allocation2 + $0x70] sm:$0xff] %v1145
    %1182 = vst [vmem:[#allocation2 + $0x78] sm:$0xff] %v1146
    %1183 = vst [vmem:[#allocation2 + $0x80] sm:$0xff] %v1147
    %1184 = vst [vmem:[#allocation2 + $0x88] sm:$0xff] %v1148
    %1185 = vst [vmem:[#allocation2 + $0x90] sm:$0xff] %v1149
    %1186 = vst [vmem:[#allocation2 + $0x98] sm:$0xff] %v1150
    %1187 = vst [vmem:[#allocation2 + $0xa0] sm:$0xff] %v1151
    %1188 = vst [vmem:[#allocation2 + $0xa8] sm:$0xff] %v1152
    %1189 = vst [vmem:[#allocation2 + $0xb0] sm:$0xff] %v1153
    %1190 = vst [vmem:[#allocation2 + $0xb8] sm:$0xff] %v1154
    %1191 = vst [vmem:[#allocation2 + $0xc0] sm:$0xff] %v1155
    %1192 = vst [vmem:[#allocation2 + $0xc8] sm:$0xff] %v1156
    %1193 = vst [vmem:[#allocation2 + $0xd0] sm:$0xff] %v1157
    %1194 = vst [vmem:[#allocation2 + $0xd8] sm:$0xff] %v1158
    %1195 = vst [vmem:[#allocation2 + $0xe0] sm:$0xff] %v1159
    %1196 = vst [vmem:[#allocation2 + $0xe8] sm:$0xff] %v1160
    %1197 = vst [vmem:[#allocation2 + $0xf0] sm:$0xff] %v1161
    %1198 = vst [vmem:[#allocation2 + $0xf8] sm:$0xff] %v1162
    %1199 = vst [vmem:[#allocation2 + $0x100] sm:$0xff] %v1163
    %1200 = vst [vmem:[#allocation2 + $0x108] sm:$0xff] %v1164
    %1201 = vst [vmem:[#allocation2 + $0x110] sm:$0xff] %v1165
    %1202 = vst [vmem:[#allocation2 + $0x118] sm:$0xff] %v1166
    %v1203 = vld [vmem:[#allocation2] sm:$0xff]
    %v1204 = vld [vmem:[#allocation2 + $0x8] sm:$0xff]
    %v1205 = vld [vmem:[#allocation2 + $0x10] sm:$0xff]
    %v1206 = vld [vmem:[#allocation2 + $0x18] sm:$0xff]
    %1207 = vst [vmem:[#allocation3] sm:$0xff] %v1203
    %1208 = vst [vmem:[#allocation3 + $0x48] sm:$0xff] %v1204
    %1209 = vst [vmem:[#allocation3 + $0x90] sm:$0xff] %v1205
    %1210 = vst [vmem:[#allocation3 + $0xd8] sm:$0xff] %v1206
    %v1211 = vld [vmem:[#allocation2 + $0x20] sm:$0xff]
    %v1212 = vld [vmem:[#allocation2 + $0x28] sm:$0xff]
    %v1213 = vld [vmem:[#allocation2 + $0x30] sm:$0xff]
    %v1214 = vld [vmem:[#allocation2 + $0x38] sm:$0xff]
    %1215 = vst [vmem:[#allocation3 + $0x8] sm:$0xff] %v1211
    %1216 = vst [vmem:[#allocation3 + $0x50] sm:$0xff] %v1212
    %1217 = vst [vmem:[#allocation3 + $0x98] sm:$0xff] %v1213
    %1218 = vst [vmem:[#allocation3 + $0xe0] sm:$0xff] %v1214
    %v1219 = vld [vmem:[#allocation2 + $0x40] sm:$0xff]
    %v1220 = vld [vmem:[#allocation2 + $0x48] sm:$0xff]
    %v1221 = vld [vmem:[#allocation2 + $0x50] sm:$0xff]
    %v1222 = vld [vmem:[#allocation2 + $0x58] sm:$0xff]
    %1223 = vst [vmem:[#allocation3 + $0x10] sm:$0xff] %v1219
    %1224 = vst [vmem:[#allocation3 + $0x58] sm:$0xff] %v1220
    %1225 = vst [vmem:[#allocation3 + $0xa0] sm:$0xff] %v1221
    %1226 = vst [vmem:[#allocation3 + $0xe8] sm:$0xff] %v1222
    %v1227 = vld [vmem:[#allocation2 + $0x60] sm:$0xff]
    %v1228 = vld [vmem:[#allocation2 + $0x68] sm:$0xff]
    %v1229 = vld [vmem:[#allocation2 + $0x70] sm:$0xff]
    %v1230 = vld [vmem:[#allocation2 + $0x78] sm:$0xff]
    %1231 = vst [vmem:[#allocation3 + $0x18] sm:$0xff] %v1227
    %1232 = vst [vmem:[#allocation3 + $0x60] sm:$0xff] %v1228
    %1233 = vst [vmem:[#allocation3 + $0xa8] sm:$0xff] %v1229
    %1234 = vst [vmem:[#allocation3 + $0xf0] sm:$0xff] %v1230
    %v1235 = vld [vmem:[#allocation2 + $0x80] sm:$0xff]
    %v1236 = vld [vmem:[#allocation2 + $0x88] sm:$0xff]
    %v1237 = vld [vmem:[#allocation2 + $0x90] sm:$0xff]
    %v1238 = vld [vmem:[#allocation2 + $0x98] sm:$0xff]
    %1239 = vst [vmem:[#allocation3 + $0x20] sm:$0xff] %v1235
    %1240 = vst [vmem:[#allocation3 + $0x68] sm:$0xff] %v1236
    %1241 = vst [vmem:[#allocation3 + $0xb0] sm:$0xff] %v1237
    %1242 = vst [vmem:[#allocation3 + $0xf8] sm:$0xff] %v1238
    %v1243 = vld [vmem:[#allocation2 + $0xa0] sm:$0xff]
    %v1244 = vld [vmem:[#allocation2 + $0xa8] sm:$0xff]
    %v1245 = vld [vmem:[#allocation2 + $0xb0] sm:$0xff]
    %v1246 = vld [vmem:[#allocation2 + $0xb8] sm:$0xff]
    %1247 = vst [vmem:[#allocation3 + $0x28] sm:$0xff] %v1243
    %1248 = vst [vmem:[#allocation3 + $0x70] sm:$0xff] %v1244
    %1249 = vst [vmem:[#allocation3 + $0xb8] sm:$0xff] %v1245
    %1250 = vst [vmem:[#allocation3 + $0x100] sm:$0xff] %v1246
    %v1251 = vld [vmem:[#allocation2 + $0xc0] sm:$0xff]
    %v1252 = vld [vmem:[#allocation2 + $0xc8] sm:$0xff]
    %v1253 = vld [vmem:[#allocation2 + $0xd0] sm:$0xff]
    %v1254 = vld [vmem:[#allocation2 + $0xd8] sm:$0xff]
    %1255 = vst [vmem:[#allocation3 + $0x30] sm:$0xff] %v1251
    %1256 = vst [vmem:[#allocation3 + $0x78] sm:$0xff] %v1252
    %1257 = vst [vmem:[#allocation3 + $0xc0] sm:$0xff] %v1253
    %1258 = vst [vmem:[#allocation3 + $0x108] sm:$0xff] %v1254
    %v1259 = vld [vmem:[#allocation2 + $0xe0] sm:$0xff]
    %v1260 = vld [vmem:[#allocation2 + $0xe8] sm:$0xff]
    %v1261 = vld [vmem:[#allocation2 + $0xf0] sm:$0xff]
    %v1262 = vld [vmem:[#allocation2 + $0xf8] sm:$0xff]
    %1263 = vst [vmem:[#allocation3 + $0x38] sm:$0xff] %v1259
    %1264 = vst [vmem:[#allocation3 + $0x80] sm:$0xff] %v1260
    %1265 = vst [vmem:[#allocation3 + $0xc8] sm:$0xff] %v1261
    %1266 = vst [vmem:[#allocation3 + $0x110] sm:$0xff] %v1262
    %v1267 = vld [vmem:[#allocation2 + $0x100] sm:$0xff]
    %v1268 = vld [vmem:[#allocation2 + $0x108] sm:$0xff]
    %v1269 = vld [vmem:[#allocation2 + $0x110] sm:$0xff]
    %v1270 = vld [vmem:[#allocation2 + $0x118] sm:$0xff]
    %1271 = vst [vmem:[#allocation3 + $0x40] sm:$0xff] %v1267
    %1272 = vst [vmem:[#allocation3 + $0x88] sm:$0xff] %v1268
    %1273 = vst [vmem:[#allocation3 + $0xd0] sm:$0xff] %v1269
    %1274 = vst [vmem:[#allocation3 + $0x118] sm:$0xff] %v1270
    %v1275 = vld [vmem:[#allocation3] sm:$0xff]
    %v1276 = vld [vmem:[#allocation3 + $0x8] sm:$0xff]
    %v1277 = vld [vmem:[#allocation3 + $0x10] sm:$0xff]
    %v1278 = vld [vmem:[#allocation3 + $0x18] sm:$0xff]
    %v1279 = vld [vmem:[#allocation3 + $0x20] sm:$0xff]
    %v1280 = vld [vmem:[#allocation3 + $0x28] sm:$0xff]
    %v1281 = vld [vmem:[#allocation3 + $0x30] sm:$0xff]
    %v1282 = vld [vmem:[#allocation3 + $0x38] sm:$0xff]
    %v1283 = vld [vmem:[#allocation3 + $0x40] sm:$0xff]
    %v1284 = vld [vmem:[#allocation3 + $0x48] sm:$0xff]
    %v1285 = vld [vmem:[#allocation3 + $0x50] sm:$0xff]
    %v1286 = vld [vmem:[#allocation3 + $0x58] sm:$0xff]
    %v1287 = vld [vmem:[#allocation3 + $0x60] sm:$0xff]
    %v1288 = vld [vmem:[#allocation3 + $0x68] sm:$0xff]
    %v1289 = vld [vmem:[#allocation3 + $0x70] sm:$0xff]
    %v1290 = vld [vmem:[#allocation3 + $0x78] sm:$0xff]
    %v1291 = vld [vmem:[#allocation3 + $0x80] sm:$0xff]
    %v1292 = vld [vmem:[#allocation3 + $0x88] sm:$0xff]
    %v1293 = vld [vmem:[#allocation3 + $0x90] sm:$0xff]
    %v1294 = vld [vmem:[#allocation3 + $0x98] sm:$0xff]
    %v1295 = vld [vmem:[#allocation3 + $0xa0] sm:$0xff]
    %v1296 = vld [vmem:[#allocation3 + $0xa8] sm:$0xff]
    %v1297 = vld [vmem:[#allocation3 + $0xb0] sm:$0xff]
    %v1298 = vld [vmem:[#allocation3 + $0xb8] sm:$0xff]
    %v1299 = vld [vmem:[#allocation3 + $0xc0] sm:$0xff]
    %v1300 = vld [vmem:[#allocation3 + $0xc8] sm:$0xff]
    %v1301 = vld [vmem:[#allocation3 + $0xd0] sm:$0xff]
    %v1302 = vld [vmem:[#allocation3 + $0xd8] sm:$0xff]
    %v1303 = vld [vmem:[#allocation3 + $0xe0] sm:$0xff]
    %v1304 = vld [vmem:[#allocation3 + $0xe8] sm:$0xff]
    %v1305 = vld [vmem:[#allocation3 + $0xf0] sm:$0xff]
    %v1306 = vld [vmem:[#allocation3 + $0xf8] sm:$0xff]
    %v1307 = vld [vmem:[#allocation3 + $0x100] sm:$0xff]
    %v1308 = vld [vmem:[#allocation3 + $0x108] sm:$0xff]
    %v1309 = vld [vmem:[#allocation3 + $0x110] sm:$0xff]
    %v1310 = vld [vmem:[#allocation3 + $0x118] sm:$0xff]
    %v1311 = vld [vmem:[#allocation4] sm:$0xf]
    %v1312 = vld [vmem:[#allocation4 + $0x4] sm:$0xf]
    %v1313 = vld [vmem:[#allocation4 + $0x8] sm:$0xf]
    %v1314 = vld [vmem:[#allocation4 + $0xc] sm:$0xf]
    %v1315 = vld [vmem:[#allocation4 + $0x10] sm:$0xf]
    %v1316 = vld [vmem:[#allocation4 + $0x14] sm:$0xf]
    %v1317 = vld [vmem:[#allocation4 + $0x18] sm:$0xf]
    %v1318 = vld [vmem:[#allocation4 + $0x1c] sm:$0xf]
    %v1319 = vld [vmem:[#allocation4 + $0x20] sm:$0xf]
    %v1320 = vld [vmem:[#allocation4 + $0x24] sm:$0xf]
    %v1321 = vld [vmem:[#allocation4 + $0x28] sm:$0xf]
    %v1322 = vld [vmem:[#allocation4 + $0x2c] sm:$0xf]
    %v1323 = vld [vmem:[#allocation4 + $0x30] sm:$0xf]
    %v1324 = vld [vmem:[#allocation4 + $0x34] sm:$0xf]
    %v1325 = vld [vmem:[#allocation4 + $0x38] sm:$0xf]
    %v1326 = vld [vmem:[#allocation4 + $0x3c] sm:$0xf]
    %v1327 = vld [vmem:[#allocation4 + $0x40] sm:$0xf]
    %v1328 = vld [vmem:[#allocation4 + $0x44] sm:$0xf]
    %v1329 = vld [vmem:[#allocation4 + $0x48] sm:$0xf]
    %v1330 = vld [vmem:[#allocation4 + $0x4c] sm:$0xf]
    %v1331 = vld [vmem:[#allocation4 + $0x50] sm:$0xf]
    %v1332 = vld [vmem:[#allocation4 + $0x54] sm:$0xf]
    %v1333 = vld [vmem:[#allocation4 + $0x58] sm:$0xf]
    %v1334 = vld [vmem:[#allocation4 + $0x5c] sm:$0xf]
    %v1335 = vld [vmem:[#allocation4 + $0x60] sm:$0xf]
    %v1336 = vld [vmem:[#allocation4 + $0x64] sm:$0xf]
    %v1337 = vld [vmem:[#allocation4 + $0x68] sm:$0xf]
    %v1338 = vld [vmem:[#allocation4 + $0x6c] sm:$0xf]
    %v1339 = vld [vmem:[#allocation4 + $0x70] sm:$0xf]
    %v1340 = vld [vmem:[#allocation4 + $0x74] sm:$0xf]
    %v1341 = vld [vmem:[#allocation4 + $0x78] sm:$0xf]
    %v1342 = vld [vmem:[#allocation4 + $0x7c] sm:$0xf]
    %v1343 = vld [vmem:[#allocation4 + $0x80] sm:$0xf]
    %v1344 = vld [vmem:[#allocation4 + $0x84] sm:$0xf]
    %v1345 = vld [vmem:[#allocation4 + $0x88] sm:$0xf]
    %v1346 = vld [vmem:[#allocation4 + $0x8c] sm:$0xf]
    %v1347 = vld [vmem:[#allocation4 + $0x90] sm:$0xf]
    %v1348 = vld [vmem:[#allocation4 + $0x94] sm:$0xf]
    %v1349 = vld [vmem:[#allocation4 + $0x98] sm:$0xf]
    %v1350 = vld [vmem:[#allocation4 + $0x9c] sm:$0xf]
    %v1351 = vld [vmem:[#allocation4 + $0xa0] sm:$0xf]
    %v1352 = vld [vmem:[#allocation4 + $0xa4] sm:$0xf]
    %v1353 = vld [vmem:[#allocation4 + $0xa8] sm:$0xf]
    %v1354 = vld [vmem:[#allocation4 + $0xac] sm:$0xf]
    %v1355 = vld [vmem:[#allocation4 + $0xb0] sm:$0xf]
    %v1356 = vld [vmem:[#allocation4 + $0xb4] sm:$0xf]
    %v1357 = vld [vmem:[#allocation4 + $0xb8] sm:$0xf]
    %v1358 = vld [vmem:[#allocation4 + $0xbc] sm:$0xf]
    %v1359 = vld [vmem:[#allocation4 + $0xc0] sm:$0xf]
    %v1360 = vld [vmem:[#allocation4 + $0xc4] sm:$0xf]
    %v1361 = vld [vmem:[#allocation4 + $0xc8] sm:$0xf]
    %v1362 = vld [vmem:[#allocation4 + $0xcc] sm:$0xf]
    %v1363 = vld [vmem:[#allocation4 + $0xd0] sm:$0xf]
    %v1364 = vld [vmem:[#allocation4 + $0xd4] sm:$0xf]
    %v1365 = vld [vmem:[#allocation4 + $0xd8] sm:$0xf]
    %v1366 = vld [vmem:[#allocation4 + $0xdc] sm:$0xf]
    %v1367 = vld [vmem:[#allocation4 + $0xe0] sm:$0xf]
    %v1368 = vld [vmem:[#allocation4 + $0xe4] sm:$0xf]
    %v1369 = vld [vmem:[#allocation4 + $0xe8] sm:$0xf]
    %v1370 = vld [vmem:[#allocation4 + $0xec] sm:$0xf]
    %v1371 = vld [vmem:[#allocation4 + $0xf0] sm:$0xf]
    %v1372 = vld [vmem:[#allocation4 + $0xf4] sm:$0xf]
    %v1373 = vld [vmem:[#allocation4 + $0xf8] sm:$0xf]
    %v1374 = vld [vmem:[#allocation4 + $0xfc] sm:$0xf]
    %v1375 = vld [vmem:[#allocation4 + $0x100] sm:$0xf]
    %v1376 = vld [vmem:[#allocation4 + $0x104] sm:$0xf]
    %v1377 = vld [vmem:[#allocation4 + $0x108] sm:$0xf]
    %v1378 = vld [vmem:[#allocation4 + $0x10c] sm:$0xf]
    %v1379 = vld [vmem:[#allocation4 + $0x110] sm:$0xf]
    %v1380 = vld [vmem:[#allocation4 + $0x114] sm:$0xf]
    %v1381 = vld [vmem:[#allocation4 + $0x118] sm:$0xf]
    %v1382 = vld [vmem:[#allocation4 + $0x11c] sm:$0xf]
    %v1383 = vld [vmem:[#allocation4 + $0x120] sm:$0xf]
    %v1384 = vld [vmem:[#allocation4 + $0x124] sm:$0xf]
    %v1385 = vld [vmem:[#allocation4 + $0x128] sm:$0xf]
    %v1386 = vld [vmem:[#allocation4 + $0x12c] sm:$0xf]
    %v1387 = vld [vmem:[#allocation4 + $0x130] sm:$0xf]
    %v1388 = vld [vmem:[#allocation4 + $0x134] sm:$0xf]
    %v1389 = vld [vmem:[#allocation4 + $0x138] sm:$0xf]
    %v1390 = vld [vmem:[#allocation4 + $0x13c] sm:$0xf]
    %v1391 = vld [vmem:[#allocation4 + $0x140] sm:$0xf]
    %v1392 = vld [vmem:[#allocation4 + $0x144] sm:$0xf]
    %v1393 = vld [vmem:[#allocation4 + $0x148] sm:$0xf]
    %v1394 = vld [vmem:[#allocation4 + $0x14c] sm:$0xf]
    %v1395 = vld [vmem:[#allocation4 + $0x150] sm:$0xf]
    %v1396 = vld [vmem:[#allocation4 + $0x154] sm:$0xf]
    %v1397 = vld [vmem:[#allocation4 + $0x158] sm:$0xf]
    %v1398 = vld [vmem:[#allocation4 + $0x15c] sm:$0xf]
    %v1399 = vld [vmem:[#allocation4 + $0x160] sm:$0xf]
    %v1400 = vld [vmem:[#allocation4 + $0x164] sm:$0xf]
    %v1401 = vld [vmem:[#allocation4 + $0x168] sm:$0xf]
    %v1402 = vld [vmem:[#allocation4 + $0x16c] sm:$0xf]
    %v1403 = vld [vmem:[#allocation4 + $0x170] sm:$0xf]
    %v1404 = vld [vmem:[#allocation4 + $0x174] sm:$0xf]
    %v1405 = vld [vmem:[#allocation4 + $0x178] sm:$0xf]
    %v1406 = vld [vmem:[#allocation4 + $0x17c] sm:$0xf]
    %v1407 = vld [vmem:[#allocation4 + $0x180] sm:$0xf]
    %v1408 = vld [vmem:[#allocation4 + $0x184] sm:$0xf]
    %v1409 = vld [vmem:[#allocation4 + $0x188] sm:$0xf]
    %v1410 = vld [vmem:[#allocation4 + $0x18c] sm:$0xf]
    %v1411 = vld [vmem:[#allocation4 + $0x190] sm:$0xf]
    %v1412 = vld [vmem:[#allocation4 + $0x194] sm:$0xf]
    %v1413 = vld [vmem:[#allocation4 + $0x198] sm:$0xf]
    %v1414 = vld [vmem:[#allocation4 + $0x19c] sm:$0xf]
    %v1415 = vld [vmem:[#allocation4 + $0x1a0] sm:$0xf]
    %v1416 = vld [vmem:[#allocation4 + $0x1a4] sm:$0xf]
    %v1417 = vld [vmem:[#allocation4 + $0x1a8] sm:$0xf]
    %v1418 = vld [vmem:[#allocation4 + $0x1ac] sm:$0xf]
    %v1419 = vld [vmem:[#allocation4 + $0x1b0] sm:$0xf]
    %v1420 = vld [vmem:[#allocation4 + $0x1b4] sm:$0xf]
    %v1421 = vld [vmem:[#allocation4 + $0x1b8] sm:$0xf]
    %v1422 = vld [vmem:[#allocation4 + $0x1bc] sm:$0xf]
    %v1423 = vld [vmem:[#allocation4 + $0x1c0] sm:$0xf]
    %v1424 = vld [vmem:[#allocation4 + $0x1c4] sm:$0xf]
    %v1425 = vld [vmem:[#allocation4 + $0x1c8] sm:$0xf]
    %v1426 = vld [vmem:[#allocation4 + $0x1cc] sm:$0xf]
    %v1427 = vld [vmem:[#allocation4 + $0x1d0] sm:$0xf]
    %v1428 = vld [vmem:[#allocation4 + $0x1d4] sm:$0xf]
    %v1429 = vld [vmem:[#allocation4 + $0x1d8] sm:$0xf]
    %v1430 = vld [vmem:[#allocation4 + $0x1dc] sm:$0xf]
    %v1431 = vld [vmem:[#allocation4 + $0x1e0] sm:$0xf]
    %v1432 = vld [vmem:[#allocation4 + $0x1e4] sm:$0xf]
    %v1433 = vld [vmem:[#allocation4 + $0x1e8] sm:$0xf]
    %v1434 = vld [vmem:[#allocation4 + $0x1ec] sm:$0xf]
    %v1435 = vld [vmem:[#allocation4 + $0x1f0] sm:$0xf]
    %v1436 = vld [vmem:[#allocation4 + $0x1f4] sm:$0xf]
    %v1437 = vld [vmem:[#allocation4 + $0x1f8] sm:$0xf]
    %v1438 = vld [vmem:[#allocation4 + $0x1fc] sm:$0xf]
    %v1439 = vld [vmem:[#allocation4 + $0x200] sm:$0xf]
    %v1440 = vld [vmem:[#allocation4 + $0x204] sm:$0xf]
    %v1441 = vld [vmem:[#allocation4 + $0x208] sm:$0xf]
    %v1442 = vld [vmem:[#allocation4 + $0x20c] sm:$0xf]
    %v1443 = vld [vmem:[#allocation4 + $0x210] sm:$0xf]
    %v1444 = vld [vmem:[#allocation4 + $0x214] sm:$0xf]
    %v1445 = vld [vmem:[#allocation4 + $0x218] sm:$0xf]
    %v1446 = vld [vmem:[#allocation4 + $0x21c] sm:$0xf]
    %v1447 = vld [vmem:[#allocation4 + $0x220] sm:$0xf]
    %v1448 = vld [vmem:[#allocation4 + $0x224] sm:$0xf]
    %v1449 = vld [vmem:[#allocation4 + $0x228] sm:$0xf]
    %v1450 = vld [vmem:[#allocation4 + $0x22c] sm:$0xf]
    %v1451 = vld [vmem:[#allocation4 + $0x230] sm:$0xf]
    %v1452 = vld [vmem:[#allocation4 + $0x234] sm:$0xf]
    %v1453 = vld [vmem:[#allocation4 + $0x238] sm:$0xf]
    %v1454 = vld [vmem:[#allocation4 + $0x23c] sm:$0xf]
    %v1455 = vld [vmem:[%s6] sm:$0x1]
    %v1457 = vlaneseq
    %v1458 = vshrl.u32 %v1457, 7
    %v1459 = vsub.s32 0, %v1458
    %v1460 = vrot.slane %v1455, %v1459
    %v1606 = vunpack.c.l.b16 %v1311
    %v1607 = vunpack.c.l.b16 %v1312
    %v1608 = vunpack.c.l.b16 %v1313
    %v1609 = vunpack.c.l.b16 %v1314
    %v1610 = vunpack.c.l.b16 %v1315
    %v1611 = vunpack.c.l.b16 %v1316
    %v1612 = vunpack.c.l.b16 %v1317
    %v1613 = vunpack.c.l.b16 %v1318
    %v1614 = vunpack.c.l.b16 %v1319
    %v1615 = vunpack.c.l.b16 %v1320
    %v1616 = vunpack.c.l.b16 %v1321
    %v1617 = vunpack.c.l.b16 %v1322
    %v1618 = vunpack.c.l.b16 %v1323
    %v1619 = vunpack.c.l.b16 %v1324
    %v1620 = vunpack.c.l.b16 %v1325
    %v1621 = vunpack.c.l.b16 %v1326
    %v1622 = vunpack.c.l.b16 %v1327
    %v1623 = vunpack.c.l.b16 %v1328
    %v1624 = vunpack.c.l.b16 %v1329
    %v1625 = vunpack.c.l.b16 %v1330
    %v1626 = vunpack.c.l.b16 %v1331
    %v1627 = vunpack.c.l.b16 %v1332
    %v1628 = vunpack.c.l.b16 %v1333
    %v1629 = vunpack.c.l.b16 %v1334
    %v1630 = vunpack.c.l.b16 %v1335
    %v1631 = vunpack.c.l.b16 %v1336
    %v1632 = vunpack.c.l.b16 %v1337
    %v1633 = vunpack.c.l.b16 %v1338
    %v1634 = vunpack.c.l.b16 %v1339
    %v1635 = vunpack.c.l.b16 %v1340
    %v1636 = vunpack.c.l.b16 %v1341
    %v1637 = vunpack.c.l.b16 %v1342
    %v1638 = vunpack.c.l.b16 %v1343
    %v1639 = vunpack.c.l.b16 %v1344
    %v1640 = vunpack.c.l.b16 %v1345
    %v1641 = vunpack.c.l.b16 %v1346
    %v1642 = vunpack.c.l.b16 %v1347
    %v1643 = vunpack.c.l.b16 %v1348
    %v1644 = vunpack.c.l.b16 %v1349
    %v1645 = vunpack.c.l.b16 %v1350
    %v1646 = vunpack.c.l.b16 %v1351
    %v1647 = vunpack.c.l.b16 %v1352
    %v1648 = vunpack.c.l.b16 %v1353
    %v1649 = vunpack.c.l.b16 %v1354
    %v1650 = vunpack.c.l.b16 %v1355
    %v1651 = vunpack.c.l.b16 %v1356
    %v1652 = vunpack.c.l.b16 %v1357
    %v1653 = vunpack.c.l.b16 %v1358
    %v1654 = vunpack.c.l.b16 %v1359
    %v1655 = vunpack.c.l.b16 %v1360
    %v1656 = vunpack.c.l.b16 %v1361
    %v1657 = vunpack.c.l.b16 %v1362
    %v1658 = vunpack.c.l.b16 %v1363
    %v1659 = vunpack.c.l.b16 %v1364
    %v1660 = vunpack.c.l.b16 %v1365
    %v1661 = vunpack.c.l.b16 %v1366
    %v1662 = vunpack.c.l.b16 %v1367
    %v1663 = vunpack.c.l.b16 %v1368
    %v1664 = vunpack.c.l.b16 %v1369
    %v1665 = vunpack.c.l.b16 %v1370
    %v1666 = vunpack.c.l.b16 %v1371
    %v1667 = vunpack.c.l.b16 %v1372
    %v1668 = vunpack.c.l.b16 %v1373
    %v1669 = vunpack.c.l.b16 %v1374
    %v1670 = vunpack.c.l.b16 %v1375
    %v1671 = vunpack.c.l.b16 %v1376
    %v1672 = vunpack.c.l.b16 %v1377
    %v1673 = vunpack.c.l.b16 %v1378
    %v1674 = vunpack.c.l.b16 %v1379
    %v1675 = vunpack.c.l.b16 %v1380
    %v1676 = vunpack.c.l.b16 %v1381
    %v1677 = vunpack.c.l.b16 %v1382
    %v1678 = vunpack.c.l.b16 %v1383
    %v1679 = vunpack.c.l.b16 %v1384
    %v1680 = vunpack.c.l.b16 %v1385
    %v1681 = vunpack.c.l.b16 %v1386
    %v1682 = vunpack.c.l.b16 %v1387
    %v1683 = vunpack.c.l.b16 %v1388
    %v1684 = vunpack.c.l.b16 %v1389
    %v1685 = vunpack.c.l.b16 %v1390
    %v1686 = vunpack.c.l.b16 %v1391
    %v1687 = vunpack.c.l.b16 %v1392
    %v1688 = vunpack.c.l.b16 %v1393
    %v1689 = vunpack.c.l.b16 %v1394
    %v1690 = vunpack.c.l.b16 %v1395
    %v1691 = vunpack.c.l.b16 %v1396
    %v1692 = vunpack.c.l.b16 %v1397
    %v1693 = vunpack.c.l.b16 %v1398
    %v1694 = vunpack.c.l.b16 %v1399
    %v1695 = vunpack.c.l.b16 %v1400
    %v1696 = vunpack.c.l.b16 %v1401
    %v1697 = vunpack.c.l.b16 %v1402
    %v1698 = vunpack.c.l.b16 %v1403
    %v1699 = vunpack.c.l.b16 %v1404
    %v1700 = vunpack.c.l.b16 %v1405
    %v1701 = vunpack.c.l.b16 %v1406
    %v1702 = vunpack.c.l.b16 %v1407
    %v1703 = vunpack.c.l.b16 %v1408
    %v1704 = vunpack.c.l.b16 %v1409
    %v1705 = vunpack.c.l.b16 %v1410
    %v1706 = vunpack.c.l.b16 %v1411
    %v1707 = vunpack.c.l.b16 %v1412
    %v1708 = vunpack.c.l.b16 %v1413
    %v1709 = vunpack.c.l.b16 %v1414
    %v1710 = vunpack.c.l.b16 %v1415
    %v1711 = vunpack.c.l.b16 %v1416
    %v1712 = vunpack.c.l.b16 %v1417
    %v1713 = vunpack.c.l.b16 %v1418
    %v1714 = vunpack.c.l.b16 %v1419
    %v1715 = vunpack.c.l.b16 %v1420
    %v1716 = vunpack.c.l.b16 %v1421
    %v1717 = vunpack.c.l.b16 %v1422
    %v1718 = vunpack.c.l.b16 %v1423
    %v1719 = vunpack.c.l.b16 %v1424
    %v1720 = vunpack.c.l.b16 %v1425
    %v1721 = vunpack.c.l.b16 %v1426
    %v1722 = vunpack.c.l.b16 %v1427
    %v1723 = vunpack.c.l.b16 %v1428
    %v1724 = vunpack.c.l.b16 %v1429
    %v1725 = vunpack.c.l.b16 %v1430
    %v1726 = vunpack.c.l.b16 %v1431
    %v1727 = vunpack.c.l.b16 %v1432
    %v1728 = vunpack.c.l.b16 %v1433
    %v1729 = vunpack.c.l.b16 %v1434
    %v1730 = vunpack.c.l.b16 %v1435
    %v1731 = vunpack.c.l.b16 %v1436
    %v1732 = vunpack.c.l.b16 %v1437
    %v1733 = vunpack.c.l.b16 %v1438
    %v1734 = vunpack.c.l.b16 %v1439
    %v1735 = vunpack.c.l.b16 %v1440
    %v1736 = vunpack.c.l.b16 %v1441
    %v1737 = vunpack.c.l.b16 %v1442
    %v1738 = vunpack.c.l.b16 %v1443
    %v1739 = vunpack.c.l.b16 %v1444
    %v1740 = vunpack.c.l.b16 %v1445
    %v1741 = vunpack.c.l.b16 %v1446
    %v1742 = vunpack.c.l.b16 %v1447
    %v1743 = vunpack.c.l.b16 %v1448
    %v1744 = vunpack.c.l.b16 %v1449
    %v1745 = vunpack.c.l.b16 %v1450
    %v1746 = vunpack.c.l.b16 %v1451
    %v1747 = vunpack.c.l.b16 %v1452
    %v1748 = vunpack.c.l.b16 %v1453
    %v1749 = vunpack.c.l.b16 %v1454
    %v1750 = vpack.c.b16 %v1607, %v1606
    %v1751 = vpack.c.b16 %v1609, %v1608
    %v1752 = vpack.c.b16 %v1611, %v1610
    %v1753 = vpack.c.b16 %v1613, %v1612
    %v1754 = vpack.c.b16 %v1615, %v1614
    %v1755 = vpack.c.b16 %v1617, %v1616
    %v1756 = vpack.c.b16 %v1619, %v1618
    %v1757 = vpack.c.b16 %v1621, %v1620
    %v1758 = vpack.c.b16 %v1623, %v1622
    %v1759 = vpack.c.b16 %v1625, %v1624
    %v1760 = vpack.c.b16 %v1627, %v1626
    %v1761 = vpack.c.b16 %v1629, %v1628
    %v1762 = vpack.c.b16 %v1631, %v1630
    %v1763 = vpack.c.b16 %v1633, %v1632
    %v1764 = vpack.c.b16 %v1635, %v1634
    %v1765 = vpack.c.b16 %v1637, %v1636
    %v1766 = vpack.c.b16 %v1639, %v1638
    %v1767 = vpack.c.b16 %v1641, %v1640
    %v1768 = vpack.c.b16 %v1643, %v1642
    %v1769 = vpack.c.b16 %v1645, %v1644
    %v1770 = vpack.c.b16 %v1647, %v1646
    %v1771 = vpack.c.b16 %v1649, %v1648
    %v1772 = vpack.c.b16 %v1651, %v1650
    %v1773 = vpack.c.b16 %v1653, %v1652
    %v1774 = vpack.c.b16 %v1655, %v1654
    %v1775 = vpack.c.b16 %v1657, %v1656
    %v1776 = vpack.c.b16 %v1659, %v1658
    %v1777 = vpack.c.b16 %v1661, %v1660
    %v1778 = vpack.c.b16 %v1663, %v1662
    %v1779 = vpack.c.b16 %v1665, %v1664
    %v1780 = vpack.c.b16 %v1667, %v1666
    %v1781 = vpack.c.b16 %v1669, %v1668
    %v1782 = vpack.c.b16 %v1671, %v1670
    %v1783 = vpack.c.b16 %v1673, %v1672
    %v1784 = vpack.c.b16 %v1675, %v1674
    %v1785 = vpack.c.b16 %v1677, %v1676
    %v1786 = vpack.c.b16 %v1679, %v1678
    %v1787 = vpack.c.b16 %v1681, %v1680
    %v1788 = vpack.c.b16 %v1683, %v1682
    %v1789 = vpack.c.b16 %v1685, %v1684
    %v1790 = vpack.c.b16 %v1687, %v1686
    %v1791 = vpack.c.b16 %v1689, %v1688
    %v1792 = vpack.c.b16 %v1691, %v1690
    %v1793 = vpack.c.b16 %v1693, %v1692
    %v1794 = vpack.c.b16 %v1695, %v1694
    %v1795 = vpack.c.b16 %v1697, %v1696
    %v1796 = vpack.c.b16 %v1699, %v1698
    %v1797 = vpack.c.b16 %v1701, %v1700
    %v1798 = vpack.c.b16 %v1703, %v1702
    %v1799 = vpack.c.b16 %v1705, %v1704
    %v1800 = vpack.c.b16 %v1707, %v1706
    %v1801 = vpack.c.b16 %v1709, %v1708
    %v1802 = vpack.c.b16 %v1711, %v1710
    %v1803 = vpack.c.b16 %v1713, %v1712
    %v1804 = vpack.c.b16 %v1715, %v1714
    %v1805 = vpack.c.b16 %v1717, %v1716
    %v1806 = vpack.c.b16 %v1719, %v1718
    %v1807 = vpack.c.b16 %v1721, %v1720
    %v1808 = vpack.c.b16 %v1723, %v1722
    %v1809 = vpack.c.b16 %v1725, %v1724
    %v1810 = vpack.c.b16 %v1727, %v1726
    %v1811 = vpack.c.b16 %v1729, %v1728
    %v1812 = vpack.c.b16 %v1731, %v1730
    %v1813 = vpack.c.b16 %v1733, %v1732
    %v1814 = vpack.c.b16 %v1735, %v1734
    %v1815 = vpack.c.b16 %v1737, %v1736
    %v1816 = vpack.c.b16 %v1739, %v1738
    %v1817 = vpack.c.b16 %v1741, %v1740
    %v1818 = vpack.c.b16 %v1743, %v1742
    %v1819 = vpack.c.b16 %v1745, %v1744
    %v1820 = vpack.c.b16 %v1747, %v1746
    %v1821 = vpack.c.b16 %v1749, %v1748
    %1894 = vmatprep.subr.bf16.mxu0 0
    %1895 = vmatpush1.bf16.msra.mxu0 %v1750
    %1896 = vmatprep.subr.bf16.mxu0 0
    %1897 = vmatpush1.bf16.msra.mxu0 %v1751
    %1898 = vmatprep.subr.bf16.mxu0 0
    %1899 = vmatpush1.bf16.msra.mxu0 %v1752
    %1900 = vmatprep.subr.bf16.mxu0 0
    %1901 = vmatpush1.bf16.msra.mxu0 %v1753
    %1902 = vmatprep.subr.bf16.mxu0 0
    %1903 = vmatpush1.bf16.msra.mxu0 %v1754
    %1904 = vmatprep.subr.bf16.mxu0 0
    %1905 = vmatpush1.bf16.msra.mxu0 %v1755
    %1906 = vmatprep.subr.bf16.mxu0 0
    %1907 = vmatpush1.bf16.msra.mxu0 %v1756
    %1908 = vmatprep.subr.bf16.mxu0 0
    %1909 = vmatpush1.bf16.msra.mxu0 %v1757
    %1910 = vmatprep.subr.bf16.mxu0 0
    %1911 = vmatpush1.bf16.msra.mxu0 %v1758
    %1912 = vmatprep.subr.bf16.mxu0 0
    %1913 = vmatpush1.bf16.msra.mxu0 %v1759
    %1914 = vmatprep.subr.bf16.mxu0 0
    %1915 = vmatpush1.bf16.msra.mxu0 %v1760
    %1916 = vmatprep.subr.bf16.mxu0 0
    %1917 = vmatpush1.bf16.msra.mxu0 %v1761
    %1918 = vmatprep.subr.bf16.mxu0 0
    %1919 = vmatpush1.bf16.msra.mxu0 %v1762
    %1920 = vmatprep.subr.bf16.mxu0 0
    %1921 = vmatpush1.bf16.msra.mxu0 %v1763
    %1922 = vmatprep.subr.bf16.mxu0 0
    %1923 = vmatpush1.bf16.msra.mxu0 %v1764
    %1924 = vmatprep.subr.bf16.mxu0 0
    %1925 = vmatpush1.bf16.msra.mxu0 %v1765
    %1926 = vmatprep.mubr.bf16.mxu0 %v1276
    %1927 = vmatmul.mubr.bf16.gmra.mrb[0].mxu0 %v1275
    %v1928 = vpop.f32.mrb[0].mxu0
    %v1929 = vadd.f32 %v1460, %v1928
    %v1930 = vpop.f32.mrb[0].mxu0
    %v1931 = vpop.f32.mrb[0].mxu0
    %v1932 = vadd.f32 %v1460, %v1931
    %v1933 = vpop.f32.mrb[0].mxu0
    %1934 = vmatprep.mubr.bf16.mxu0 %v1285
    %1935 = vmatmul.mubr.bf16.gmra.mrb[0].mxu0 %v1284
    %v1936 = vpop.f32.mrb[0].mxu0
    %v1937 = vadd.f32 %v1460, %v1936
    %v1938 = vpop.f32.mrb[0].mxu0
    %v1939 = vpop.f32.mrb[0].mxu0
    %v1940 = vadd.f32 %v1460, %v1939
    %v1941 = vpop.f32.mrb[0].mxu0
    %1942 = vmatprep.mubr.bf16.mxu0 %v1294
    %1943 = vmatmul.mubr.bf16.gmra.mrb[0].mxu0 %v1293
    %v1944 = vpop.f32.mrb[0].mxu0
    %v1945 = vadd.f32 %v1460, %v1944
    %v1946 = vpop.f32.mrb[0].mxu0
    %v1947 = vpop.f32.mrb[0].mxu0
    %v1948 = vadd.f32 %v1460, %v1947
    %v1949 = vpop.f32.mrb[0].mxu0
    %1950 = vmatprep.mubr.bf16.mxu0 %v1303
    %1951 = vmatmul.mubr.bf16.gmra.mrb[0].mxu0 %v1302
    %v1952 = vpop.f32.mrb[0].mxu0
    %v1953 = vadd.f32 %v1460, %v1952
    %v1954 = vpop.f32.mrb[0].mxu0
    %v1955 = vpop.f32.mrb[0].mxu0
    %v1956 = vadd.f32 %v1460, %v1955
    %v1957 = vpop.f32.mrb[0].mxu0
    %1958 = vdwg.mxu0
    %1959 = vmatprep.subr.bf16.mxu0 0
    %1960 = vmatpush1.bf16.msra.mxu0 %v1766
    %1961 = vmatprep.subr.bf16.mxu0 0
    %1962 = vmatpush1.bf16.msra.mxu0 %v1767
    %1963 = vmatprep.subr.bf16.mxu0 0
    %1964 = vmatpush1.bf16.msra.mxu0 %v1768
    %1965 = vmatprep.subr.bf16.mxu0 0
    %1966 = vmatpush1.bf16.msra.mxu0 %v1769
    %1967 = vmatprep.subr.bf16.mxu0 0
    %1968 = vmatpush1.bf16.msra.mxu0 %v1770
    %1969 = vmatprep.subr.bf16.mxu0 0
    %1970 = vmatpush1.bf16.msra.mxu0 %v1771
    %1971 = vmatprep.subr.bf16.mxu0 0
    %1972 = vmatpush1.bf16.msra.mxu0 %v1772
    %1973 = vmatprep.subr.bf16.mxu0 0
    %1974 = vmatpush1.bf16.msra.mxu0 %v1773
    %1975 = vmatprep.subr.bf16.mxu0 0
    %1976 = vmatpush1.bf16.msra.mxu0 %v1774
    %1977 = vmatprep.subr.bf16.mxu0 0
    %1978 = vmatpush1.bf16.msra.mxu0 %v1775
    %1979 = vmatprep.subr.bf16.mxu0 0
    %1980 = vmatpush1.bf16.msra.mxu0 %v1776
    %1981 = vmatprep.subr.bf16.mxu0 0
    %1982 = vmatpush1.bf16.msra.mxu0 %v1777
    %1983 = vmatprep.subr.bf16.mxu0 0
    %1984 = vmatpush1.bf16.msra.mxu0 %v1778
    %1985 = vmatprep.subr.bf16.mxu0 0
    %1986 = vmatpush1.bf16.msra.mxu0 %v1779
    %1987 = vmatprep.subr.bf16.mxu0 0
    %1988 = vmatpush1.bf16.msra.mxu0 %v1780
    %1989 = vmatprep.subr.bf16.mxu0 0
    %1990 = vmatpush1.bf16.msra.mxu0 %v1781
    %1991 = vmatprep.mubr.bf16.mxu0 %v1278
    %1992 = vmatmul.mubr.bf16.gmra.mrb[0].mxu0 %v1277
    %v1993 = vpop.f32.mrb[0].mxu0
    %v1994 = vadd.f32 %v1929, %v1993
    %v1995 = vpop.f32.mrb[0].mxu0
    %v1996 = vpop.f32.mrb[0].mxu0
    %v1997 = vadd.f32 %v1932, %v1996
    %v1998 = vpop.f32.mrb[0].mxu0
    %1999 = vmatprep.mubr.bf16.mxu0 %v1287
    %2000 = vmatmul.mubr.bf16.gmra.mrb[0].mxu0 %v1286
    %v2001 = vpop.f32.mrb[0].mxu0
    %v2002 = vadd.f32 %v1937, %v2001
    %v2003 = vpop.f32.mrb[0].mxu0
    %v2004 = vpop.f32.mrb[0].mxu0
    %v2005 = vadd.f32 %v1940, %v2004
    %v2006 = vpop.f32.mrb[0].mxu0
    %2007 = vmatprep.mubr.bf16.mxu0 %v1296
    %2008 = vmatmul.mubr.bf16.gmra.mrb[0].mxu0 %v1295
    %v2009 = vpop.f32.mrb[0].mxu0
    %v2010 = vadd.f32 %v1945, %v2009
    %v2011 = vpop.f32.mrb[0].mxu0
    %v2012 = vpop.f32.mrb[0].mxu0
    %v2013 = vadd.f32 %v1948, %v2012
    %v2014 = vpop.f32.mrb[0].mxu0
    %2015 = vmatprep.mubr.bf16.mxu0 %v1305
    %2016 = vmatmul.mubr.bf16.gmra.mrb[0].mxu0 %v1304
    %v2017 = vpop.f32.mrb[0].mxu0
    %v2018 = vadd.f32 %v1953, %v2017
    %v2019 = vpop.f32.mrb[0].mxu0
    %v2020 = vpop.f32.mrb[0].mxu0
    %v2021 = vadd.f32 %v1956, %v2020
    %v2022 = vpop.f32.mrb[0].mxu0
    %2023 = vdwg.mxu0
    %2024 = vmatprep.subr.bf16.mxu0 0
    %2025 = vmatpush1.bf16.msra.mxu0 %v1782
    %2026 = vmatprep.subr.bf16.mxu0 0
    %2027 = vmatpush1.bf16.msra.mxu0 %v1783
    %2028 = vmatprep.subr.bf16.mxu0 0
    %2029 = vmatpush1.bf16.msra.mxu0 %v1784
    %2030 = vmatprep.subr.bf16.mxu0 0
    %2031 = vmatpush1.bf16.msra.mxu0 %v1785
    %2032 = vmatprep.subr.bf16.mxu0 0
    %2033 = vmatpush1.bf16.msra.mxu0 %v1786
    %2034 = vmatprep.subr.bf16.mxu0 0
    %2035 = vmatpush1.bf16.msra.mxu0 %v1787
    %2036 = vmatprep.subr.bf16.mxu0 0
    %2037 = vmatpush1.bf16.msra.mxu0 %v1788
    %2038 = vmatprep.subr.bf16.mxu0 0
    %2039 = vmatpush1.bf16.msra.mxu0 %v1789
    %2040 = vmatprep.subr.bf16.mxu0 0
    %2041 = vmatpush1.bf16.msra.mxu0 %v1790
    %2042 = vmatprep.subr.bf16.mxu0 0
    %2043 = vmatpush1.bf16.msra.mxu0 %v1791
    %2044 = vmatprep.subr.bf16.mxu0 0
    %2045 = vmatpush1.bf16.msra.mxu0 %v1792
    %2046 = vmatprep.subr.bf16.mxu0 0
    %2047 = vmatpush1.bf16.msra.mxu0 %v1793
    %2048 = vmatprep.subr.bf16.mxu0 0
    %2049 = vmatpush1.bf16.msra.mxu0 %v1794
    %2050 = vmatprep.subr.bf16.mxu0 0
    %2051 = vmatpush1.bf16.msra.mxu0 %v1795
    %2052 = vmatprep.subr.bf16.mxu0 0
    %2053 = vmatpush1.bf16.msra.mxu0 %v1796
    %2054 = vmatprep.subr.bf16.mxu0 0
    %2055 = vmatpush1.bf16.msra.mxu0 %v1797
    %2056 = vmatprep.mubr.bf16.mxu0 %v1280
    %2057 = vmatmul.mubr.bf16.gmra.mrb[0].mxu0 %v1279
    %v2058 = vpop.f32.mrb[0].mxu0
    %v2059 = vadd.f32 %v1994, %v2058
    %v2060 = vpop.f32.mrb[0].mxu0
    %v2061 = vpop.f32.mrb[0].mxu0
    %v2062 = vadd.f32 %v1997, %v2061
    %v2063 = vpop.f32.mrb[0].mxu0
    %2064 = vmatprep.mubr.bf16.mxu0 %v1289
    %2065 = vmatmul.mubr.bf16.gmra.mrb[0].mxu0 %v1288
    %v2066 = vpop.f32.mrb[0].mxu0
    %v2067 = vadd.f32 %v2002, %v2066
    %v2068 = vpop.f32.mrb[0].mxu0
    %v2069 = vpop.f32.mrb[0].mxu0
    %v2070 = vadd.f32 %v2005, %v2069
    %v2071 = vpop.f32.mrb[0].mxu0
    %2072 = vmatprep.mubr.bf16.mxu0 %v1298
    %2073 = vmatmul.mubr.bf16.gmra.mrb[0].mxu0 %v1297
    %v2074 = vpop.f32.mrb[0].mxu0
    %v2075 = vadd.f32 %v2010, %v2074
    %v2076 = vpop.f32.mrb[0].mxu0
    %v2077 = vpop.f32.mrb[0].mxu0
    %v2078 = vadd.f32 %v2013, %v2077
    %v2079 = vpop.f32.mrb[0].mxu0
    %2080 = vmatprep.mubr.bf16.mxu0 %v1307
    %2081 = vmatmul.mubr.bf16.gmra.mrb[0].mxu0 %v1306
    %v2082 = vpop.f32.mrb[0].mxu0
    %v2083 = vadd.f32 %v2018, %v2082
    %v2084 = vpop.f32.mrb[0].mxu0
    %v2085 = vpop.f32.mrb[0].mxu0
    %v2086 = vadd.f32 %v2021, %v2085
    %v2087 = vpop.f32.mrb[0].mxu0
    %2088 = vdwg.mxu0
    %2089 = vmatprep.subr.bf16.mxu0 0
    %2090 = vmatpush1.bf16.msra.mxu0 %v1798
    %2091 = vmatprep.subr.bf16.mxu0 0
    %2092 = vmatpush1.bf16.msra.mxu0 %v1799
    %2093 = vmatprep.subr.bf16.mxu0 0
    %2094 = vmatpush1.bf16.msra.mxu0 %v1800
    %2095 = vmatprep.subr.bf16.mxu0 0
    %2096 = vmatpush1.bf16.msra.mxu0 %v1801
    %2097 = vmatprep.subr.bf16.mxu0 0
    %2098 = vmatpush1.bf16.msra.mxu0 %v1802
    %2099 = vmatprep.subr.bf16.mxu0 0
    %2100 = vmatpush1.bf16.msra.mxu0 %v1803
    %2101 = vmatprep.subr.bf16.mxu0 0
    %2102 = vmatpush1.bf16.msra.mxu0 %v1804
    %2103 = vmatprep.subr.bf16.mxu0 0
    %2104 = vmatpush1.bf16.msra.mxu0 %v1805
    %2105 = vmatprep.subr.bf16.mxu0 0
    %2106 = vmatpush1.bf16.msra.mxu0 %v1806
    %2107 = vmatprep.subr.bf16.mxu0 0
    %2108 = vmatpush1.bf16.msra.mxu0 %v1807
    %2109 = vmatprep.subr.bf16.mxu0 0
    %2110 = vmatpush1.bf16.msra.mxu0 %v1808
    %2111 = vmatprep.subr.bf16.mxu0 0
    %2112 = vmatpush1.bf16.msra.mxu0 %v1809
    %2113 = vmatprep.subr.bf16.mxu0 0
    %2114 = vmatpush1.bf16.msra.mxu0 %v1810
    %2115 = vmatprep.subr.bf16.mxu0 0
    %2116 = vmatpush1.bf16.msra.mxu0 %v1811
    %2117 = vmatprep.subr.bf16.mxu0 0
    %2118 = vmatpush1.bf16.msra.mxu0 %v1812
    %2119 = vmatprep.subr.bf16.mxu0 0
    %2120 = vmatpush1.bf16.msra.mxu0 %v1813
    %2121 = vmatprep.mubr.bf16.mxu0 %v1282
    %2122 = vmatmul.mubr.bf16.gmra.mrb[0].mxu0 %v1281
    %v2123 = vpop.f32.mrb[0].mxu0
    %v2124 = vadd.f32 %v2059, %v2123
    %v2125 = vpop.f32.mrb[0].mxu0
    %v2126 = vpop.f32.mrb[0].mxu0
    %v2127 = vadd.f32 %v2062, %v2126
    %v2128 = vpop.f32.mrb[0].mxu0
    %2129 = vmatprep.mubr.bf16.mxu0 %v1291
    %2130 = vmatmul.mubr.bf16.gmra.mrb[0].mxu0 %v1290
    %v2131 = vpop.f32.mrb[0].mxu0
    %v2132 = vadd.f32 %v2067, %v2131
    %v2133 = vpop.f32.mrb[0].mxu0
    %v2134 = vpop.f32.mrb[0].mxu0
    %v2135 = vadd.f32 %v2070, %v2134
    %v2136 = vpop.f32.mrb[0].mxu0
    %2137 = vmatprep.mubr.bf16.mxu0 %v1300
    %2138 = vmatmul.mubr.bf16.gmra.mrb[0].mxu0 %v1299
    %v2139 = vpop.f32.mrb[0].mxu0
    %v2140 = vadd.f32 %v2075, %v2139
    %v2141 = vpop.f32.mrb[0].mxu0
    %v2142 = vpop.f32.mrb[0].mxu0
    %v2143 = vadd.f32 %v2078, %v2142
    %v2144 = vpop.f32.mrb[0].mxu0
    %2145 = vmatprep.mubr.bf16.mxu0 %v1309
    %2146 = vmatmul.mubr.bf16.gmra.mrb[0].mxu0 %v1308
    %v2147 = vpop.f32.mrb[0].mxu0
    %v2148 = vadd.f32 %v2083, %v2147
    %v2149 = vpop.f32.mrb[0].mxu0
    %v2150 = vpop.f32.mrb[0].mxu0
    %v2151 = vadd.f32 %v2086, %v2150
    %v2152 = vpop.f32.mrb[0].mxu0
    %2153 = vdwg.mxu0
    %2154 = vmatprep.subr.bf16.mxu0 0
    %2155 = vmatpush1.bf16.msra.mxu0 %v1814
    %2156 = vmatprep.subr.bf16.mxu0 0
    %2157 = vmatpush1.bf16.msra.mxu0 %v1815
    %2158 = vmatprep.subr.bf16.mxu0 0
    %2159 = vmatpush1.bf16.msra.mxu0 %v1816
    %2160 = vmatprep.subr.bf16.mxu0 0
    %2161 = vmatpush1.bf16.msra.mxu0 %v1817
    %2162 = vmatprep.subr.bf16.mxu0 0
    %2163 = vmatpush1.bf16.msra.mxu0 %v1818
    %2164 = vmatprep.subr.bf16.mxu0 0
    %2165 = vmatpush1.bf16.msra.mxu0 %v1819
    %2166 = vmatprep.subr.bf16.mxu0 0
    %2167 = vmatpush1.bf16.msra.mxu0 %v1820
    %2168 = vmatprep.subr.bf16.mxu0 0
    %2169 = vmatpush1.bf16.msra.mxu0 %v1821
    %2170 = vmatprep.subr.bf16.mxu0 0
    %2171 = vmatpush1.bf16.msra.mxu0 0
    %2172 = vmatprep.subr.bf16.mxu0 0
    %2173 = vmatpush1.bf16.msra.mxu0 0
    %2174 = vmatprep.subr.bf16.mxu0 0
    %2175 = vmatpush1.bf16.msra.mxu0 0
    %2176 = vmatprep.subr.bf16.mxu0 0
    %2177 = vmatpush1.bf16.msra.mxu0 0
    %2178 = vmatprep.subr.bf16.mxu0 0
    %2179 = vmatpush1.bf16.msra.mxu0 0
    %2180 = vmatprep.subr.bf16.mxu0 0
    %2181 = vmatpush1.bf16.msra.mxu0 0
    %2182 = vmatprep.subr.bf16.mxu0 0
    %2183 = vmatpush1.bf16.msra.mxu0 0
    %2184 = vmatprep.subr.bf16.mxu0 0
    %2185 = vmatpush1.bf16.msra.mxu0 0
    %2186 = vmatprep.mubr.bf16.mxu0 0
    %2187 = vmatmul.mubr.bf16.gmra.mrb[0].mxu0 %v1283
    %v2188 = vpop.f32.mrb[0].mxu0
    %v2189 = vadd.f32 %v2124, %v2188
    %v2190 = vpop.f32.mrb[0].mxu0
    %v2191 = vpop.f32.mrb[0].mxu0
    %v2192 = vadd.f32 %v2127, %v2191
    %v2193 = vpop.f32.mrb[0].mxu0
    %2194 = vmatprep.mubr.bf16.mxu0 0
    %2195 = vmatmul.mubr.bf16.gmra.mrb[0].mxu0 %v1292
    %v2196 = vpop.f32.mrb[0].mxu0
    %v2197 = vadd.f32 %v2132, %v2196
    %v2198 = vpop.f32.mrb[0].mxu0
    %v2199 = vpop.f32.mrb[0].mxu0
    %v2200 = vadd.f32 %v2135, %v2199
    %v2201 = vpop.f32.mrb[0].mxu0
    %2202 = vmatprep.mubr.bf16.mxu0 0
    %2203 = vmatmul.mubr.bf16.gmra.mrb[0].mxu0 %v1301
    %v2204 = vpop.f32.mrb[0].mxu0
    %v2205 = vadd.f32 %v2140, %v2204
    %v2206 = vpop.f32.mrb[0].mxu0
    %v2207 = vpop.f32.mrb[0].mxu0
    %v2208 = vadd.f32 %v2143, %v2207
    %v2209 = vpop.f32.mrb[0].mxu0
    %2210 = vmatprep.mubr.bf16.mxu0 0
    %2211 = vmatmul.mubr.bf16.gmra.mrb[0].mxu0 %v1310
    %v2212 = vpop.f32.mrb[0].mxu0
    %v2213 = vadd.f32 %v2148, %v2212
    %v2214 = vpop.f32.mrb[0].mxu0
    %v2215 = vpop.f32.mrb[0].mxu0
    %v2216 = vadd.f32 %v2151, %v2215
    %v2217 = vpop.f32.mrb[0].mxu0
    %2218 = vdwg.mxu0
    %v2219 = vmax.f32 %v2189, 0.0
    %v2220 = vmax.f32 %v2192, 0.0
    %v2221 = vmax.f32 %v2197, 0.0
    %v2222 = vmax.f32 %v2200, 0.0
    %v2223 = vmax.f32 %v2205, 0.0
    %v2224 = vmax.f32 %v2208, 0.0
    %v2225 = vmax.f32 %v2213, 0.0
    %v2226 = vmax.f32 %v2216, 0.0
    %2227 = vst [vmem:[%s7] sm:$0xff] %v2219
    %2228 = vst [vmem:[%s7 + $0x8] sm:$0xff] %v2220
    %2229 = vst [vmem:[%s7 + $0x10] sm:$0xff] %v2221
    %2230 = vst [vmem:[%s7 + $0x18] sm:$0xff] %v2222
    %2231 = vst [vmem:[%s7 + $0x20] sm:$0xff] %v2223
    %2232 = vst [vmem:[%s7 + $0x28] sm:$0xff] %v2224
    %2233 = vst [vmem:[%s7 + $0x30] sm:$0xff] %v2225
    %2234 = vst [vmem:[%s7 + $0x38] sm:$0xff] %v2226
    // Predicated region
    $region34: #{point_pillars_vit_cnn.1} parent=1 // pred_check
      _
    $region35: #{point_pillars_vit_cnn.1} parent=1 // pred_check_branch
      %2236 = sbr.rel (0) target = $region37
    $region36: #{point_pillars_vit_cnn.1} parent=1 // pred_region
      _
    $region37: #{point_pillars_vit_cnn.1} parent=1 // pred_fallthru
      _
    // Predicated region
    $region38: #{point_pillars_vit_cnn.1} parent=1 // pred_check
      _
    $region39: #{point_pillars_vit_cnn.1} parent=1 // pred_check_branch
      %2238 = sbr.rel (0) target = $region41
    $region40: #{point_pillars_vit_cnn.1} parent=1 // pred_region
      _
    $region41: #{point_pillars_vit_cnn.1} parent=1 // pred_fallthru
      _
    %2239 = vsyncpa [#allocation5], 1

</llo_original>
